<compile_context>
chip_gen: v5e
topology: v5e:2x2
jax: 0.10.0
libtpu: 0.0.40
codegen_flags: <defaults>
</compile_context>

<pallas_src>
import math
import functools

import jax
import jax.numpy as jnp
from jax import lax
from jax.experimental import pallas as pl
from jax.experimental.pallas import tpu as pltpu

# ---------------- config (stand-in for `config` module) ----------------
PAD = 0
HIDDEN_DIM = 16          # config.hidden_dim

# ---------------- model hyper-parameters (small, deterministic) --------
N_SRC_VOCAB = 50
LEN_MAX_SEQ = 16
D_WORD_VEC = 32
D_MODEL = 32
N_LAYERS = 2
N_HEAD = 2
D_K = 16
D_V = 16
D_INNER = 64

B = 2
L = 8

# ---- packed slab layouts -------------------------------------------------
# Slab A (attention), per layer (A_ROWS, 128):
#   rows 0:32, cols   0: 32  = wq            (d_model x n_head*d_k)
#   rows 0:32, cols  32: 64  = wk
#   rows 0:32, cols  64: 96  = wv
#   rows 0:32, cols  96:128  = wo            (n_head*d_v x d_model)
#   row  32  , cols   0:128  = [bq | bk | bv | bo]
NQ = N_HEAD * D_K            # 32
NV = N_HEAD * D_V            # 32
A_ROWS = 40                  # 33 used, padded to multiple of 8
A_COLS = 2 * NQ + NV + D_MODEL   # 128

# Slab B (FFN + layernorm vectors), per layer (B_ROWS, 64):
#   rows   0:32            = w1  (d_model x d_inner)
#   rows  32:96, cols 0:32 = w2  (d_inner x d_model)
#   row   96               = bf1 (d_inner)
#   row   97,   cols 0:32  = bf2
#   row   98 / 99          = ln1_gamma / ln1_beta
#   row  100 / 101         = ln2_gamma / ln2_beta
B_ROWS = 104                 # 102 used, padded to multiple of 8
B_COLS = D_INNER             # 64

FC_COLS = 128                # fc_w padded to 128 lanes -> lane-dense output store


# ---------------- parameter construction (plain JAX glue) ---------------
def positional_encoding(max_len, d_model, padding_idx=None):
    position = jnp.arange(0.0, max_len, dtype=jnp.float32)[:, None]
    div_term = jnp.exp(jnp.arange(0.0, d_model, 2, dtype=jnp.float32)
                       * -(math.log(10000.0) / d_model))
    pe = jnp.zeros((max_len, d_model), dtype=jnp.float32)
    pe = pe.at[:, 0::2].set(jnp.sin(position * div_term))
    pe = pe.at[:, 1::2].set(jnp.cos(position * div_term))
    if padding_idx is not None:
        pe = pe.at[padding_idx].set(0.0)
    return pe


def _normal(key, shape, scale=0.02):
    return scale * jax.random.normal(key, shape, dtype=jnp.float32)


def init_params(key):
    n_keys = 2 + 6 * N_LAYERS
    ks = iter(jax.random.split(key, n_keys))

    word_emb = _normal(next(ks), (N_SRC_VOCAB, D_WORD_VEC))
    word_emb = word_emb.at[PAD].set(0.0)                      # padding_idx=PAD
    # NOTE: spec uses positional_encoding(n_position, d_word_vec, padding_idx=1)
    pos_enc = positional_encoding(LEN_MAX_SEQ + 1, D_WORD_VEC, padding_idx=1)

    slab_a_list, slab_b_list = [], []
    for _ in range(N_LAYERS):
        wq = _normal(next(ks), (D_MODEL, NQ))
        wk = _normal(next(ks), (D_MODEL, NQ))
        wv = _normal(next(ks), (D_MODEL, NV))
        wo = _normal(next(ks), (NV, D_MODEL))
        w1 = _normal(next(ks), (D_MODEL, D_INNER))
        w2 = _normal(next(ks), (D_INNER, D_MODEL))

        bq = jnp.zeros((NQ,), jnp.float32)
        bk = jnp.zeros((NQ,), jnp.float32)
        bv = jnp.zeros((NV,), jnp.float32)
        bo = jnp.zeros((D_MODEL,), jnp.float32)
        bf1 = jnp.zeros((D_INNER,), jnp.float32)
        bf2 = jnp.zeros((D_MODEL,), jnp.float32)
        ln1_g = jnp.ones((D_MODEL,), jnp.float32)
        ln1_b = jnp.zeros((D_MODEL,), jnp.float32)
        ln2_g = jnp.ones((D_MODEL,), jnp.float32)
        ln2_b = jnp.zeros((D_MODEL,), jnp.float32)

        a = jnp.zeros((A_ROWS, A_COLS), jnp.float32)
        a = a.at[0:D_MODEL, 0:NQ].set(wq)
        a = a.at[0:D_MODEL, NQ:2 * NQ].set(wk)
        a = a.at[0:D_MODEL, 2 * NQ:2 * NQ + NV].set(wv)
        a = a.at[0:NV, 2 * NQ + NV:A_COLS].set(wo)
        a = a.at[D_MODEL, 0:NQ].set(bq)
        a = a.at[D_MODEL, NQ:2 * NQ].set(bk)
        a = a.at[D_MODEL, 2 * NQ:2 * NQ + NV].set(bv)
        a = a.at[D_MODEL, 2 * NQ + NV:A_COLS].set(bo)
        slab_a_list.append(a)

        bslab = jnp.zeros((B_ROWS, B_COLS), jnp.float32)
        bslab = bslab.at[0:D_MODEL, :].set(w1)
        bslab = bslab.at[D_MODEL:D_MODEL + D_INNER, 0:D_MODEL].set(w2)
        bslab = bslab.at[96, :].set(bf1)
        bslab = bslab.at[97, 0:D_MODEL].set(bf2)
        bslab = bslab.at[98, 0:D_MODEL].set(ln1_g)
        bslab = bslab.at[99, 0:D_MODEL].set(ln1_b)
        bslab = bslab.at[100, 0:D_MODEL].set(ln2_g)
        bslab = bslab.at[101, 0:D_MODEL].set(ln2_b)
        slab_b_list.append(bslab)

    fc_w = _normal(next(ks), (D_MODEL, 2 * HIDDEN_DIM))       # Linear(d_model, 2*hidden, bias=False)
    fc_w_pad = jnp.zeros((D_MODEL, FC_COLS), jnp.float32).at[:, :2 * HIDDEN_DIM].set(fc_w)

    return {"word_emb": word_emb, "pos_enc": pos_enc,
            "slab_a": jnp.stack(slab_a_list),       # (N_LAYERS, 40, 128)
            "slab_b": jnp.stack(slab_b_list),       # (N_LAYERS, 104, 64)
            "fc_w": fc_w_pad}                       # (32, 128)


# ---------------- fused Pallas kernel ------------------------------------
def _layer_norm(x, gamma, beta, eps=1e-5):
    mu = jnp.mean(x, axis=-1, keepdims=True)
    var = jnp.mean((x - mu) ** 2, axis=-1, keepdims=True)
    return (x - mu) * lax.rsqrt(var + eps) * gamma + beta


def tran_encoder_kernel(x_ref, npm_ref, bias_ref, wa_ref, wb_ref, fcw_ref, out_ref,
                        *, n_layers, n_head, d_k, d_v, d_model, batch, seq):
    x = x_ref[...]                         # (B*L, D)
    npm = npm_ref[...]                     # (B*L, 1)  1.0 = non-pad
    inv_temp = 1.0 / math.sqrt(float(d_k))
    nq = n_head * d_k
    nv = n_head * d_v
    o_off = 2 * nq + nv                    # lane offset of wo / bo inside slab A

    for layer in range(n_layers):          # static unroll (N_LAYERS = 2)
        wa = wa_ref[layer]                 # (40, 128)
        wb = wb_ref[layer]                 # (104, 64)

        # --- fused Q|K|V projection: one 128-lane MXU pass ---------------
        # (cols o_off: are x@wo garbage; same MXU cost, ignored.)
        qkv = jnp.dot(x, wa[0:d_model, :],
                      preferred_element_type=jnp.float32) + wa[d_model:d_model + 1, :]
        wo = wa[0:nv, o_off:o_off + d_model]            # (n_head*d_v, d_model)
        bo = wa[d_model:d_model + 1, o_off:o_off + d_model]

        # --- multi-head self-attention, Wo accumulated per head ----------
        batch_rows = []
        for b in range(batch):             # static: B=2
            r0 = b * seq
            bias_b = bias_ref[b]           # (L, L) additive bias, -1e9 on PAD keys
            acc = jnp.zeros((seq, d_model), jnp.float32)
            for h in range(n_head):        # static: N_HEAD=2
                qh = qkv[r0:r0 + seq, h * d_k:(h + 1) * d_k]
                kh = qkv[r0:r0 + seq, nq + h * d_k:nq + (h + 1) * d_k]
                vh = qkv[r0:r0 + seq, 2 * nq + h * d_v:2 * nq + (h + 1) * d_v]
                # contract last dims: no materialized kh.T
                s = lax.dot_general(qh, kh, (((1,), (1,)), ((), ())),
                                    preferred_element_type=jnp.float32) * inv_temp
                s = s + bias_b
                s = s - jnp.max(s, axis=-1, keepdims=True)
                p = jnp.exp(s)
                p = p * pl.reciprocal(jnp.sum(p, axis=-1, keepdims=True), approx=True)
                ctx_h = jnp.dot(p, vh, preferred_element_type=jnp.float32)
                # == concat(ctx_h over heads) @ wo, accumulated in registers
                acc = acc + jnp.dot(ctx_h, wo[h * d_v:(h + 1) * d_v, :],
                                    preferred_element_type=jnp.float32)
            batch_rows.append(acc)
        attn = jnp.concatenate(batch_rows, axis=0) + bo          # (B*L, D)

        # TODO(synk): dropout is identity (inference mode); training RNG dropout not implemented.
        attn = _layer_norm(attn + x, wb[98:99, 0:d_model], wb[99:100, 0:d_model])
        attn = attn * npm                                        # enc_output *= non_pad_mask

        # --- position-wise FFN (Conv1d k=1 == per-position Linear) -------
        hdn = jnp.maximum(
            jnp.dot(attn, wb[0:d_model, :], preferred_element_type=jnp.float32)
            + wb[96:97, :], 0.0)
        ffn = jnp.dot(hdn, wb[d_model:d_model + 64, 0:d_model],
                      preferred_element_type=jnp.float32) + wb[97:98, 0:d_model]
        x = _layer_norm(ffn + attn, wb[100:101, 0:d_model], wb[101:102, 0:d_model]) * npm

    # --- final projection (fc_w padded to 128 lanes -> lane-dense store) --
    out_ref[...] = jnp.dot(x, fcw_ref[...], preferred_element_type=jnp.float32)


def tran_encoder_fused(x_flat, non_pad_mask_flat, attn_bias, params):
    kernel = functools.partial(
        tran_encoder_kernel,
        n_layers=N_LAYERS, n_head=N_HEAD, d_k=D_K, d_v=D_V,
        d_model=D_MODEL, batch=B, seq=L)
    # No grid / no BlockSpec pipelining: total footprint < 0.2 MiB, fully VMEM-resident.
    # TODO(synk): for realistic B*L (hundreds+) add a row-parallel grid for v7x's 2 TCs.
    out_pad = pl.pallas_call(
        kernel,
        out_shape=jax.ShapeDtypeStruct((B * L, FC_COLS), jnp.float32),
        cost_estimate=pl.CostEstimate(flops=760_000, transcendentals=600,
                                      bytes_accessed=135_000),
    )(x_flat, non_pad_mask_flat, attn_bias,
      params["slab_a"], params["slab_b"], params["fc_w"])
    return out_pad[:, :2 * HIDDEN_DIM]


# ---------------- full forward pass --------------------------------------
def tran_encoder_forward(src_seq, src_pos, params):
    b, l = src_seq.shape
    # get_attn_key_pad_mask -> additive bias (-1e9 where key token == PAD)
    attn_bias = jnp.broadcast_to(
        ((src_seq == PAD).astype(jnp.float32) * -1e9)[:, None, :], (b, l, l))
    # get_non_pad_mask: (B*L, 1) float
    non_pad_mask = (src_seq != PAD).astype(jnp.float32).reshape(b * l, 1)

    # embedding / positional gathers stay in plain JAX (glue)
    enc = params["word_emb"][src_seq] + params["pos_enc"][src_pos]     # (B, L, D)
    x_flat = enc.reshape(b * l, D_MODEL)

    out_flat = tran_encoder_fused(x_flat, non_pad_mask, attn_bias, params)

    enc_output = out_flat.reshape(b, l, 2 * HIDDEN_DIM)
    enc_feature = enc_output.reshape(-1, 2 * HIDDEN_DIM)
    # matches the PyTorch reference: enc_output[:, -1, :].reshape(2, b, hidden_dim)
    enc_h = enc_output[:, -1, :].reshape(2, b, HIDDEN_DIM)
    return enc_output, enc_feature, (enc_h, enc_h)


if __name__ == "__main__":
    key = jax.random.PRNGKey(0)
    pkey, skey = jax.random.split(key)
    params = init_params(pkey)

    # token ids in [2, vocab) (no PAD tokens), positions 1..L
    src_seq = jax.random.randint(skey, (B, L), 2, N_SRC_VOCAB, dtype=jnp.int32)
    src_pos = jnp.broadcast_to(jnp.arange(1, L + 1, dtype=jnp.int32)[None, :], (B, L))

    enc_output, enc_feature, (h0, h1) = tran_encoder_forward(src_seq, src_pos, params)
    jax.block_until_ready((enc_output, enc_feature, h0, h1))

    assert enc_output.shape == (B, L, 2 * HIDDEN_DIM)
    assert enc_feature.shape == (B * L, 2 * HIDDEN_DIM)
    assert h0.shape == (2, B, HIDDEN_DIM)
    assert bool(jnp.all(jnp.isfinite(enc_output)))
    print("KERNEL_OK")
</pallas_src>

<mosaic_0001>
module attributes {stable_mosaic.version = 11 : i64} {
  func.func @tran_encoder_kernel(%arg0: memref<16x32xf32, #tpu.memory_space<vmem>>, %arg1: memref<16x1xf32, #tpu.memory_space<vmem>>, %arg2: memref<2x8x8xf32, #tpu.memory_space<vmem>>, %arg3: memref<2x40x128xf32, #tpu.memory_space<vmem>>, %arg4: memref<2x104x64xf32, #tpu.memory_space<vmem>>, %arg5: memref<32x128xf32, #tpu.memory_space<vmem>>, %arg6: memref<16x128xf32, #tpu.memory_space<vmem>>) attributes {dimension_semantics = [], scalar_prefetch = 0 : i64, scratch_operands = 0 : i64, tpu.core_type = #tpu.core_type<tc>} {
    %c0 = arith.constant 0 : index
    %c0_0 = arith.constant 0 : index
    %0 = vector.load %arg0[%c0, %c0_0] : memref<16x32xf32, #tpu.memory_space<vmem>>, vector<16x32xf32>
    %c0_1 = arith.constant 0 : index
    %c0_2 = arith.constant 0 : index
    %1 = vector.load %arg1[%c0_1, %c0_2] : memref<16x1xf32, #tpu.memory_space<vmem>>, vector<16x1xf32>
    %c0_3 = arith.constant 0 : index
    %c0_4 = arith.constant 0 : index
    %c0_5 = arith.constant 0 : index
    %2 = vector.load %arg3[%c0_3, %c0_4, %c0_5] : memref<2x40x128xf32, #tpu.memory_space<vmem>>, vector<1x40x128xf32>
    %3 = vector.shape_cast %2 : vector<1x40x128xf32> to vector<40x128xf32>
    %c0_6 = arith.constant 0 : index
    %c0_7 = arith.constant 0 : index
    %c0_8 = arith.constant 0 : index
    %4 = vector.load %arg4[%c0_6, %c0_7, %c0_8] : memref<2x104x64xf32, #tpu.memory_space<vmem>>, vector<1x104x64xf32>
    %5 = vector.shape_cast %4 : vector<1x104x64xf32> to vector<104x64xf32>
    %6 = vector.extract_strided_slice %3 {offsets = [0, 0], sizes = [32, 128], strides = [1, 1]} : vector<40x128xf32> to vector<32x128xf32>
    %cst = arith.constant dense<0.000000e+00> : vector<16x128xf32>
    %7 = tpu.matmul %0, %6, %cst {dimension_numbers = #tpu.dot_dimension_numbers<[1], [0], [0], [1], [0, 0, 1, 1], [], []>} : vector<16x32xf32>, vector<32x128xf32>, vector<16x128xf32> -> vector<16x128xf32>
    %8 = vector.extract_strided_slice %3 {offsets = [32, 0], sizes = [1, 128], strides = [1, 1]} : vector<40x128xf32> to vector<1x128xf32>
    %9 = vector.broadcast %8 : vector<1x128xf32> to vector<16x128xf32>
    %10 = arith.addf %7, %9 : vector<16x128xf32>
    %11 = vector.extract_strided_slice %3 {offsets = [0, 96], sizes = [32, 32], strides = [1, 1]} : vector<40x128xf32> to vector<32x32xf32>
    %12 = vector.extract_strided_slice %3 {offsets = [32, 96], sizes = [1, 32], strides = [1, 1]} : vector<40x128xf32> to vector<1x32xf32>
    %c0_9 = arith.constant 0 : index
    %c0_10 = arith.constant 0 : index
    %c0_11 = arith.constant 0 : index
    %13 = vector.load %arg2[%c0_9, %c0_10, %c0_11] : memref<2x8x8xf32, #tpu.memory_space<vmem>>, vector<1x8x8xf32>
    %14 = vector.shape_cast %13 : vector<1x8x8xf32> to vector<8x8xf32>
    %cst_12 = arith.constant 0.000000e+00 : f32
    %15 = vector.broadcast %cst_12 : f32 to vector<8x32xf32>
    %16 = vector.extract_strided_slice %10 {offsets = [0, 0], sizes = [8, 16], strides = [1, 1]} : vector<16x128xf32> to vector<8x16xf32>
    %17 = vector.extract_strided_slice %10 {offsets = [0, 32], sizes = [8, 16], strides = [1, 1]} : vector<16x128xf32> to vector<8x16xf32>
    %18 = vector.extract_strided_slice %10 {offsets = [0, 64], sizes = [8, 16], strides = [1, 1]} : vector<16x128xf32> to vector<8x16xf32>
    %cst_13 = arith.constant dense<0.000000e+00> : vector<8x8xf32>
    %19 = tpu.matmul %16, %17, %cst_13 {dimension_numbers = #tpu.dot_dimension_numbers<[1], [1], [0], [0], [0, 0, 1, 0], [], []>} : vector<8x16xf32>, vector<8x16xf32>, vector<8x8xf32> -> vector<8x8xf32>
    %cst_14 = arith.constant 2.500000e-01 : f32
    %20 = vector.broadcast %cst_14 : f32 to vector<8x8xf32>
    %21 = arith.mulf %19, %20 : vector<8x8xf32>
    %22 = arith.addf %21, %14 : vector<8x8xf32>
    %cst_15 = arith.constant dense<0xFF800000> : vector<8xf32>
    %23 = vector.multi_reduction <maximumf>, %22, %cst_15 [1] : vector<8x8xf32> to vector<8xf32>
    %24 = vector.shape_cast %23 : vector<8xf32> to vector<8x1xf32>
    %25 = vector.broadcast %24 : vector<8x1xf32> to vector<8x8xf32>
    %26 = arith.subf %22, %25 : vector<8x8xf32>
    %27 = math.exp %26 : vector<8x8xf32>
    %cst_16 = arith.constant dense<0.000000e+00> : vector<8xf32>
    %28 = vector.multi_reduction <add>, %27, %cst_16 [1] : vector<8x8xf32> to vector<8xf32>
    %29 = vector.shape_cast %28 : vector<8xf32> to vector<8x1xf32>
    %30 = tpu.reciprocal %29 {approx = true} : vector<8x1xf32> -> vector<8x1xf32>
    %31 = vector.broadcast %30 : vector<8x1xf32> to vector<8x8xf32>
    %32 = arith.mulf %27, %31 : vector<8x8xf32>
    %cst_17 = arith.constant dense<0.000000e+00> : vector<8x16xf32>
    %33 = tpu.matmul %32, %18, %cst_17 {dimension_numbers = #tpu.dot_dimension_numbers<[1], [0], [0], [1], [0, 0, 1, 1], [], []>} : vector<8x8xf32>, vector<8x16xf32>, vector<8x16xf32> -> vector<8x16xf32>
    %34 = vector.extract_strided_slice %11 {offsets = [0, 0], sizes = [16, 32], strides = [1, 1]} : vector<32x32xf32> to vector<16x32xf32>
    %cst_18 = arith.constant dense<0.000000e+00> : vector<8x32xf32>
    %35 = tpu.matmul %33, %34, %cst_18 {dimension_numbers = #tpu.dot_dimension_numbers<[1], [0], [0], [1], [0, 0, 1, 1], [], []>} : vector<8x16xf32>, vector<16x32xf32>, vector<8x32xf32> -> vector<8x32xf32>
    %36 = arith.addf %15, %35 : vector<8x32xf32>
    %37 = vector.extract_strided_slice %10 {offsets = [0, 16], sizes = [8, 16], strides = [1, 1]} : vector<16x128xf32> to vector<8x16xf32>
    %38 = vector.extract_strided_slice %10 {offsets = [0, 48], sizes = [8, 16], strides = [1, 1]} : vector<16x128xf32> to vector<8x16xf32>
    %39 = vector.extract_strided_slice %10 {offsets = [0, 80], sizes = [8, 16], strides = [1, 1]} : vector<16x128xf32> to vector<8x16xf32>
    %cst_19 = arith.constant dense<0.000000e+00> : vector<8x8xf32>
    %40 = tpu.matmul %37, %38, %cst_19 {dimension_numbers = #tpu.dot_dimension_numbers<[1], [1], [0], [0], [0, 0, 1, 0], [], []>} : vector<8x16xf32>, vector<8x16xf32>, vector<8x8xf32> -> vector<8x8xf32>
    %cst_20 = arith.constant 2.500000e-01 : f32
    %41 = vector.broadcast %cst_20 : f32 to vector<8x8xf32>
    %42 = arith.mulf %40, %41 : vector<8x8xf32>
    %43 = arith.addf %42, %14 : vector<8x8xf32>
    %cst_21 = arith.constant dense<0xFF800000> : vector<8xf32>
    %44 = vector.multi_reduction <maximumf>, %43, %cst_21 [1] : vector<8x8xf32> to vector<8xf32>
    %45 = vector.shape_cast %44 : vector<8xf32> to vector<8x1xf32>
    %46 = vector.broadcast %45 : vector<8x1xf32> to vector<8x8xf32>
    %47 = arith.subf %43, %46 : vector<8x8xf32>
    %48 = math.exp %47 : vector<8x8xf32>
    %cst_22 = arith.constant dense<0.000000e+00> : vector<8xf32>
    %49 = vector.multi_reduction <add>, %48, %cst_22 [1] : vector<8x8xf32> to vector<8xf32>
    %50 = vector.shape_cast %49 : vector<8xf32> to vector<8x1xf32>
    %51 = tpu.reciprocal %50 {approx = true} : vector<8x1xf32> -> vector<8x1xf32>
    %52 = vector.broadcast %51 : vector<8x1xf32> to vector<8x8xf32>
    %53 = arith.mulf %48, %52 : vector<8x8xf32>
    %cst_23 = arith.constant dense<0.000000e+00> : vector<8x16xf32>
    %54 = tpu.matmul %53, %39, %cst_23 {dimension_numbers = #tpu.dot_dimension_numbers<[1], [0], [0], [1], [0, 0, 1, 1], [], []>} : vector<8x8xf32>, vector<8x16xf32>, vector<8x16xf32> -> vector<8x16xf32>
    %55 = vector.extract_strided_slice %11 {offsets = [16, 0], sizes = [16, 32], strides = [1, 1]} : vector<32x32xf32> to vector<16x32xf32>
    %cst_24 = arith.constant dense<0.000000e+00> : vector<8x32xf32>
    %56 = tpu.matmul %54, %55, %cst_24 {dimension_numbers = #tpu.dot_dimension_numbers<[1], [0], [0], [1], [0, 0, 1, 1], [], []>} : vector<8x16xf32>, vector<16x32xf32>, vector<8x32xf32> -> vector<8x32xf32>
    %57 = arith.addf %36, %56 : vector<8x32xf32>
    %c1 = arith.constant 1 : index
    %c0_25 = arith.constant 0 : index
    %c0_26 = arith.constant 0 : index
    %58 = vector.load %arg2[%c1, %c0_25, %c0_26] : memref<2x8x8xf32, #tpu.memory_space<vmem>>, vector<1x8x8xf32>
    %59 = vector.shape_cast %58 : vector<1x8x8xf32> to vector<8x8xf32>
    %cst_27 = arith.constant 0.000000e+00 : f32
    %60 = vector.broadcast %cst_27 : f32 to vector<8x32xf32>
    %61 = vector.extract_strided_slice %10 {offsets = [8, 0], sizes = [8, 16], strides = [1, 1]} : vector<16x128xf32> to vector<8x16xf32>
    %62 = vector.extract_strided_slice %10 {offsets = [8, 32], sizes = [8, 16], strides = [1, 1]} : vector<16x128xf32> to vector<8x16xf32>
    %63 = vector.extract_strided_slice %10 {offsets = [8, 64], sizes = [8, 16], strides = [1, 1]} : vector<16x128xf32> to vector<8x16xf32>
    %cst_28 = arith.constant dense<0.000000e+00> : vector<8x8xf32>
    %64 = tpu.matmul %61, %62, %cst_28 {dimension_numbers = #tpu.dot_dimension_numbers<[1], [1], [0], [0], [0, 0, 1, 0], [], []>} : vector<8x16xf32>, vector<8x16xf32>, vector<8x8xf32> -> vector<8x8xf32>
    %cst_29 = arith.constant 2.500000e-01 : f32
    %65 = vector.broadcast %cst_29 : f32 to vector<8x8xf32>
    %66 = arith.mulf %64, %65 : vector<8x8xf32>
    %67 = arith.addf %66, %59 : vector<8x8xf32>
    %cst_30 = arith.constant dense<0xFF800000> : vector<8xf32>
    %68 = vector.multi_reduction <maximumf>, %67, %cst_30 [1] : vector<8x8xf32> to vector<8xf32>
    %69 = vector.shape_cast %68 : vector<8xf32> to vector<8x1xf32>
    %70 = vector.broadcast %69 : vector<8x1xf32> to vector<8x8xf32>
    %71 = arith.subf %67, %70 : vector<8x8xf32>
    %72 = math.exp %71 : vector<8x8xf32>
    %cst_31 = arith.constant dense<0.000000e+00> : vector<8xf32>
    %73 = vector.multi_reduction <add>, %72, %cst_31 [1] : vector<8x8xf32> to vector<8xf32>
    %74 = vector.shape_cast %73 : vector<8xf32> to vector<8x1xf32>
    %75 = tpu.reciprocal %74 {approx = true} : vector<8x1xf32> -> vector<8x1xf32>
    %76 = vector.broadcast %75 : vector<8x1xf32> to vector<8x8xf32>
    %77 = arith.mulf %72, %76 : vector<8x8xf32>
    %cst_32 = arith.constant dense<0.000000e+00> : vector<8x16xf32>
    %78 = tpu.matmul %77, %63, %cst_32 {dimension_numbers = #tpu.dot_dimension_numbers<[1], [0], [0], [1], [0, 0, 1, 1], [], []>} : vector<8x8xf32>, vector<8x16xf32>, vector<8x16xf32> -> vector<8x16xf32>
    %79 = vector.extract_strided_slice %11 {offsets = [0, 0], sizes = [16, 32], strides = [1, 1]} : vector<32x32xf32> to vector<16x32xf32>
    %cst_33 = arith.constant dense<0.000000e+00> : vector<8x32xf32>
    %80 = tpu.matmul %78, %79, %cst_33 {dimension_numbers = #tpu.dot_dimension_numbers<[1], [0], [0], [1], [0, 0, 1, 1], [], []>} : vector<8x16xf32>, vector<16x32xf32>, vector<8x32xf32> -> vector<8x32xf32>
    %81 = arith.addf %60, %80 : vector<8x32xf32>
    %82 = vector.extract_strided_slice %10 {offsets = [8, 16], sizes = [8, 16], strides = [1, 1]} : vector<16x128xf32> to vector<8x16xf32>
    %83 = vector.extract_strided_slice %10 {offsets = [8, 48], sizes = [8, 16], strides = [1, 1]} : vector<16x128xf32> to vector<8x16xf32>
    %84 = vector.extract_strided_slice %10 {offsets = [8, 80], sizes = [8, 16], strides = [1, 1]} : vector<16x128xf32> to vector<8x16xf32>
    %cst_34 = arith.constant dense<0.000000e+00> : vector<8x8xf32>
    %85 = tpu.matmul %82, %83, %cst_34 {dimension_numbers = #tpu.dot_dimension_numbers<[1], [1], [0], [0], [0, 0, 1, 0], [], []>} : vector<8x16xf32>, vector<8x16xf32>, vector<8x8xf32> -> vector<8x8xf32>
    %cst_35 = arith.constant 2.500000e-01 : f32
    %86 = vector.broadcast %cst_35 : f32 to vector<8x8xf32>
    %87 = arith.mulf %85, %86 : vector<8x8xf32>
    %88 = arith.addf %87, %59 : vector<8x8xf32>
    %cst_36 = arith.constant dense<0xFF800000> : vector<8xf32>
    %89 = vector.multi_reduction <maximumf>, %88, %cst_36 [1] : vector<8x8xf32> to vector<8xf32>
    %90 = vector.shape_cast %89 : vector<8xf32> to vector<8x1xf32>
    %91 = vector.broadcast %90 : vector<8x1xf32> to vector<8x8xf32>
    %92 = arith.subf %88, %91 : vector<8x8xf32>
    %93 = math.exp %92 : vector<8x8xf32>
    %cst_37 = arith.constant dense<0.000000e+00> : vector<8xf32>
    %94 = vector.multi_reduction <add>, %93, %cst_37 [1] : vector<8x8xf32> to vector<8xf32>
    %95 = vector.shape_cast %94 : vector<8xf32> to vector<8x1xf32>
    %96 = tpu.reciprocal %95 {approx = true} : vector<8x1xf32> -> vector<8x1xf32>
    %97 = vector.broadcast %96 : vector<8x1xf32> to vector<8x8xf32>
    %98 = arith.mulf %93, %97 : vector<8x8xf32>
    %cst_38 = arith.constant dense<0.000000e+00> : vector<8x16xf32>
    %99 = tpu.matmul %98, %84, %cst_38 {dimension_numbers = #tpu.dot_dimension_numbers<[1], [0], [0], [1], [0, 0, 1, 1], [], []>} : vector<8x8xf32>, vector<8x16xf32>, vector<8x16xf32> -> vector<8x16xf32>
    %100 = vector.extract_strided_slice %11 {offsets = [16, 0], sizes = [16, 32], strides = [1, 1]} : vector<32x32xf32> to vector<16x32xf32>
    %cst_39 = arith.constant dense<0.000000e+00> : vector<8x32xf32>
    %101 = tpu.matmul %99, %100, %cst_39 {dimension_numbers = #tpu.dot_dimension_numbers<[1], [0], [0], [1], [0, 0, 1, 1], [], []>} : vector<8x16xf32>, vector<16x32xf32>, vector<8x32xf32> -> vector<8x32xf32>
    %102 = arith.addf %81, %101 : vector<8x32xf32>
    %103 = tpu.concatenate %57, %102 in 0 : vector<8x32xf32>, vector<8x32xf32> -> vector<16x32xf32>
    %104 = vector.broadcast %12 : vector<1x32xf32> to vector<16x32xf32>
    %105 = arith.addf %103, %104 : vector<16x32xf32>
    %106 = arith.addf %105, %0 : vector<16x32xf32>
    %107 = vector.extract_strided_slice %5 {offsets = [98, 0], sizes = [1, 32], strides = [1, 1]} : vector<104x64xf32> to vector<1x32xf32>
    %108 = vector.extract_strided_slice %5 {offsets = [99, 0], sizes = [1, 32], strides = [1, 1]} : vector<104x64xf32> to vector<1x32xf32>
    %cst_40 = arith.constant dense<0.000000e+00> : vector<16xf32>
    %109 = vector.multi_reduction <add>, %106, %cst_40 [1] : vector<16x32xf32> to vector<16xf32>
    %110 = vector.shape_cast %109 : vector<16xf32> to vector<16x1xf32>
    %cst_41 = arith.constant 3.200000e+01 : f32
    %111 = vector.broadcast %cst_41 : f32 to vector<16x1xf32>
    %112 = arith.divf %110, %111 : vector<16x1xf32>
    %113 = vector.broadcast %112 : vector<16x1xf32> to vector<16x32xf32>
    %114 = arith.subf %106, %113 : vector<16x32xf32>
    %115 = arith.mulf %114, %114 : vector<16x32xf32>
    %cst_42 = arith.constant dense<0.000000e+00> : vector<16xf32>
    %116 = vector.multi_reduction <add>, %115, %cst_42 [1] : vector<16x32xf32> to vector<16xf32>
    %117 = vector.shape_cast %116 : vector<16xf32> to vector<16x1xf32>
    %cst_43 = arith.constant 3.200000e+01 : f32
    %118 = vector.broadcast %cst_43 : f32 to vector<16x1xf32>
    %119 = arith.divf %117, %118 : vector<16x1xf32>
    %120 = vector.broadcast %112 : vector<16x1xf32> to vector<16x32xf32>
    %121 = arith.subf %106, %120 : vector<16x32xf32>
    %cst_44 = arith.constant 9.99999974E-6 : f32
    %122 = vector.broadcast %cst_44 : f32 to vector<16x1xf32>
    %123 = arith.addf %119, %122 : vector<16x1xf32>
    %124 = math.rsqrt %123 : vector<16x1xf32>
    %125 = vector.broadcast %124 : vector<16x1xf32> to vector<16x32xf32>
    %126 = arith.mulf %121, %125 : vector<16x32xf32>
    %127 = vector.broadcast %107 : vector<1x32xf32> to vector<16x32xf32>
    %128 = arith.mulf %126, %127 : vector<16x32xf32>
    %129 = vector.broadcast %108 : vector<1x32xf32> to vector<16x32xf32>
    %130 = arith.addf %128, %129 : vector<16x32xf32>
    %131 = vector.broadcast %1 : vector<16x1xf32> to vector<16x32xf32>
    %132 = arith.mulf %130, %131 : vector<16x32xf32>
    %133 = vector.extract_strided_slice %5 {offsets = [0, 0], sizes = [32, 64], strides = [1, 1]} : vector<104x64xf32> to vector<32x64xf32>
    %cst_45 = arith.constant dense<0.000000e+00> : vector<16x64xf32>
    %134 = tpu.matmul %132, %133, %cst_45 {dimension_numbers = #tpu.dot_dimension_numbers<[1], [0], [0], [1], [0, 0, 1, 1], [], []>} : vector<16x32xf32>, vector<32x64xf32>, vector<16x64xf32> -> vector<16x64xf32>
    %135 = vector.extract_strided_slice %5 {offsets = [96, 0], sizes = [1, 64], strides = [1, 1]} : vector<104x64xf32> to vector<1x64xf32>
    %136 = vector.broadcast %135 : vector<1x64xf32> to vector<16x64xf32>
    %137 = arith.addf %134, %136 : vector<16x64xf32>
    %cst_46 = arith.constant 0.000000e+00 : f32
    %138 = vector.broadcast %cst_46 : f32 to vector<16x64xf32>
    %139 = arith.maximumf %137, %138 : vector<16x64xf32>
    %140 = vector.extract_strided_slice %5 {offsets = [32, 0], sizes = [64, 32], strides = [1, 1]} : vector<104x64xf32> to vector<64x32xf32>
    %cst_47 = arith.constant dense<0.000000e+00> : vector<16x32xf32>
    %141 = tpu.matmul %139, %140, %cst_47 {dimension_numbers = #tpu.dot_dimension_numbers<[1], [0], [0], [1], [0, 0, 1, 1], [], []>} : vector<16x64xf32>, vector<64x32xf32>, vector<16x32xf32> -> vector<16x32xf32>
    %142 = vector.extract_strided_slice %5 {offsets = [97, 0], sizes = [1, 32], strides = [1, 1]} : vector<104x64xf32> to vector<1x32xf32>
    %143 = vector.broadcast %142 : vector<1x32xf32> to vector<16x32xf32>
    %144 = arith.addf %141, %143 : vector<16x32xf32>
    %145 = arith.addf %144, %132 : vector<16x32xf32>
    %146 = vector.extract_strided_slice %5 {offsets = [100, 0], sizes = [1, 32], strides = [1, 1]} : vector<104x64xf32> to vector<1x32xf32>
    %147 = vector.extract_strided_slice %5 {offsets = [101, 0], sizes = [1, 32], strides = [1, 1]} : vector<104x64xf32> to vector<1x32xf32>
    %cst_48 = arith.constant dense<0.000000e+00> : vector<16xf32>
    %148 = vector.multi_reduction <add>, %145, %cst_48 [1] : vector<16x32xf32> to vector<16xf32>
    %149 = vector.shape_cast %148 : vector<16xf32> to vector<16x1xf32>
    %cst_49 = arith.constant 3.200000e+01 : f32
    %150 = vector.broadcast %cst_49 : f32 to vector<16x1xf32>
    %151 = arith.divf %149, %150 : vector<16x1xf32>
    %152 = vector.broadcast %151 : vector<16x1xf32> to vector<16x32xf32>
    %153 = arith.subf %145, %152 : vector<16x32xf32>
    %154 = arith.mulf %153, %153 : vector<16x32xf32>
    %cst_50 = arith.constant dense<0.000000e+00> : vector<16xf32>
    %155 = vector.multi_reduction <add>, %154, %cst_50 [1] : vector<16x32xf32> to vector<16xf32>
    %156 = vector.shape_cast %155 : vector<16xf32> to vector<16x1xf32>
    %cst_51 = arith.constant 3.200000e+01 : f32
    %157 = vector.broadcast %cst_51 : f32 to vector<16x1xf32>
    %158 = arith.divf %156, %157 : vector<16x1xf32>
    %159 = vector.broadcast %151 : vector<16x1xf32> to vector<16x32xf32>
    %160 = arith.subf %145, %159 : vector<16x32xf32>
    %cst_52 = arith.constant 9.99999974E-6 : f32
    %161 = vector.broadcast %cst_52 : f32 to vector<16x1xf32>
    %162 = arith.addf %158, %161 : vector<16x1xf32>
    %163 = math.rsqrt %162 : vector<16x1xf32>
    %164 = vector.broadcast %163 : vector<16x1xf32> to vector<16x32xf32>
    %165 = arith.mulf %160, %164 : vector<16x32xf32>
    %166 = vector.broadcast %146 : vector<1x32xf32> to vector<16x32xf32>
    %167 = arith.mulf %165, %166 : vector<16x32xf32>
    %168 = vector.broadcast %147 : vector<1x32xf32> to vector<16x32xf32>
    %169 = arith.addf %167, %168 : vector<16x32xf32>
    %170 = vector.broadcast %1 : vector<16x1xf32> to vector<16x32xf32>
    %171 = arith.mulf %169, %170 : vector<16x32xf32>
    %c1_53 = arith.constant 1 : index
    %c0_54 = arith.constant 0 : index
    %c0_55 = arith.constant 0 : index
    %172 = vector.load %arg3[%c1_53, %c0_54, %c0_55] : memref<2x40x128xf32, #tpu.memory_space<vmem>>, vector<1x40x128xf32>
    %173 = vector.shape_cast %172 : vector<1x40x128xf32> to vector<40x128xf32>
    %c1_56 = arith.constant 1 : index
    %c0_57 = arith.constant 0 : index
    %c0_58 = arith.constant 0 : index
    %174 = vector.load %arg4[%c1_56, %c0_57, %c0_58] : memref<2x104x64xf32, #tpu.memory_space<vmem>>, vector<1x104x64xf32>
    %175 = vector.shape_cast %174 : vector<1x104x64xf32> to vector<104x64xf32>
    %176 = vector.extract_strided_slice %173 {offsets = [0, 0], sizes = [32, 128], strides = [1, 1]} : vector<40x128xf32> to vector<32x128xf32>
    %cst_59 = arith.constant dense<0.000000e+00> : vector<16x128xf32>
    %177 = tpu.matmul %171, %176, %cst_59 {dimension_numbers = #tpu.dot_dimension_numbers<[1], [0], [0], [1], [0, 0, 1, 1], [], []>} : vector<16x32xf32>, vector<32x128xf32>, vector<16x128xf32> -> vector<16x128xf32>
    %178 = vector.extract_strided_slice %173 {offsets = [32, 0], sizes = [1, 128], strides = [1, 1]} : vector<40x128xf32> to vector<1x128xf32>
    %179 = vector.broadcast %178 : vector<1x128xf32> to vector<16x128xf32>
    %180 = arith.addf %177, %179 : vector<16x128xf32>
    %181 = vector.extract_strided_slice %173 {offsets = [0, 96], sizes = [32, 32], strides = [1, 1]} : vector<40x128xf32> to vector<32x32xf32>
    %182 = vector.extract_strided_slice %173 {offsets = [32, 96], sizes = [1, 32], strides = [1, 1]} : vector<40x128xf32> to vector<1x32xf32>
    %c0_60 = arith.constant 0 : index
    %c0_61 = arith.constant 0 : index
    %c0_62 = arith.constant 0 : index
    %183 = vector.load %arg2[%c0_60, %c0_61, %c0_62] : memref<2x8x8xf32, #tpu.memory_space<vmem>>, vector<1x8x8xf32>
    %184 = vector.shape_cast %183 : vector<1x8x8xf32> to vector<8x8xf32>
    %cst_63 = arith.constant 0.000000e+00 : f32
    %185 = vector.broadcast %cst_63 : f32 to vector<8x32xf32>
    %186 = vector.extract_strided_slice %180 {offsets = [0, 0], sizes = [8, 16], strides = [1, 1]} : vector<16x128xf32> to vector<8x16xf32>
    %187 = vector.extract_strided_slice %180 {offsets = [0, 32], sizes = [8, 16], strides = [1, 1]} : vector<16x128xf32> to vector<8x16xf32>
    %188 = vector.extract_strided_slice %180 {offsets = [0, 64], sizes = [8, 16], strides = [1, 1]} : vector<16x128xf32> to vector<8x16xf32>
    %cst_64 = arith.constant dense<0.000000e+00> : vector<8x8xf32>
    %189 = tpu.matmul %186, %187, %cst_64 {dimension_numbers = #tpu.dot_dimension_numbers<[1], [1], [0], [0], [0, 0, 1, 0], [], []>} : vector<8x16xf32>, vector<8x16xf32>, vector<8x8xf32> -> vector<8x8xf32>
    %cst_65 = arith.constant 2.500000e-01 : f32
    %190 = vector.broadcast %cst_65 : f32 to vector<8x8xf32>
    %191 = arith.mulf %189, %190 : vector<8x8xf32>
    %192 = arith.addf %191, %184 : vector<8x8xf32>
    %cst_66 = arith.constant dense<0xFF800000> : vector<8xf32>
    %193 = vector.multi_reduction <maximumf>, %192, %cst_66 [1] : vector<8x8xf32> to vector<8xf32>
    %194 = vector.shape_cast %193 : vector<8xf32> to vector<8x1xf32>
    %195 = vector.broadcast %194 : vector<8x1xf32> to vector<8x8xf32>
    %196 = arith.subf %192, %195 : vector<8x8xf32>
    %197 = math.exp %196 : vector<8x8xf32>
    %cst_67 = arith.constant dense<0.000000e+00> : vector<8xf32>
    %198 = vector.multi_reduction <add>, %197, %cst_67 [1] : vector<8x8xf32> to vector<8xf32>
    %199 = vector.shape_cast %198 : vector<8xf32> to vector<8x1xf32>
    %200 = tpu.reciprocal %199 {approx = true} : vector<8x1xf32> -> vector<8x1xf32>
    %201 = vector.broadcast %200 : vector<8x1xf32> to vector<8x8xf32>
    %202 = arith.mulf %197, %201 : vector<8x8xf32>
    %cst_68 = arith.constant dense<0.000000e+00> : vector<8x16xf32>
    %203 = tpu.matmul %202, %188, %cst_68 {dimension_numbers = #tpu.dot_dimension_numbers<[1], [0], [0], [1], [0, 0, 1, 1], [], []>} : vector<8x8xf32>, vector<8x16xf32>, vector<8x16xf32> -> vector<8x16xf32>
    %204 = vector.extract_strided_slice %181 {offsets = [0, 0], sizes = [16, 32], strides = [1, 1]} : vector<32x32xf32> to vector<16x32xf32>
    %cst_69 = arith.constant dense<0.000000e+00> : vector<8x32xf32>
    %205 = tpu.matmul %203, %204, %cst_69 {dimension_numbers = #tpu.dot_dimension_numbers<[1], [0], [0], [1], [0, 0, 1, 1], [], []>} : vector<8x16xf32>, vector<16x32xf32>, vector<8x32xf32> -> vector<8x32xf32>
    %206 = arith.addf %185, %205 : vector<8x32xf32>
    %207 = vector.extract_strided_slice %180 {offsets = [0, 16], sizes = [8, 16], strides = [1, 1]} : vector<16x128xf32> to vector<8x16xf32>
    %208 = vector.extract_strided_slice %180 {offsets = [0, 48], sizes = [8, 16], strides = [1, 1]} : vector<16x128xf32> to vector<8x16xf32>
    %209 = vector.extract_strided_slice %180 {offsets = [0, 80], sizes = [8, 16], strides = [1, 1]} : vector<16x128xf32> to vector<8x16xf32>
    %cst_70 = arith.constant dense<0.000000e+00> : vector<8x8xf32>
    %210 = tpu.matmul %207, %208, %cst_70 {dimension_numbers = #tpu.dot_dimension_numbers<[1], [1], [0], [0], [0, 0, 1, 0], [], []>} : vector<8x16xf32>, vector<8x16xf32>, vector<8x8xf32> -> vector<8x8xf32>
    %cst_71 = arith.constant 2.500000e-01 : f32
    %211 = vector.broadcast %cst_71 : f32 to vector<8x8xf32>
    %212 = arith.mulf %210, %211 : vector<8x8xf32>
    %213 = arith.addf %212, %184 : vector<8x8xf32>
    %cst_72 = arith.constant dense<0xFF800000> : vector<8xf32>
    %214 = vector.multi_reduction <maximumf>, %213, %cst_72 [1] : vector<8x8xf32> to vector<8xf32>
    %215 = vector.shape_cast %214 : vector<8xf32> to vector<8x1xf32>
    %216 = vector.broadcast %215 : vector<8x1xf32> to vector<8x8xf32>
    %217 = arith.subf %213, %216 : vector<8x8xf32>
    %218 = math.exp %217 : vector<8x8xf32>
    %cst_73 = arith.constant dense<0.000000e+00> : vector<8xf32>
    %219 = vector.multi_reduction <add>, %218, %cst_73 [1] : vector<8x8xf32> to vector<8xf32>
    %220 = vector.shape_cast %219 : vector<8xf32> to vector<8x1xf32>
    %221 = tpu.reciprocal %220 {approx = true} : vector<8x1xf32> -> vector<8x1xf32>
    %222 = vector.broadcast %221 : vector<8x1xf32> to vector<8x8xf32>
    %223 = arith.mulf %218, %222 : vector<8x8xf32>
    %cst_74 = arith.constant dense<0.000000e+00> : vector<8x16xf32>
    %224 = tpu.matmul %223, %209, %cst_74 {dimension_numbers = #tpu.dot_dimension_numbers<[1], [0], [0], [1], [0, 0, 1, 1], [], []>} : vector<8x8xf32>, vector<8x16xf32>, vector<8x16xf32> -> vector<8x16xf32>
    %225 = vector.extract_strided_slice %181 {offsets = [16, 0], sizes = [16, 32], strides = [1, 1]} : vector<32x32xf32> to vector<16x32xf32>
    %cst_75 = arith.constant dense<0.000000e+00> : vector<8x32xf32>
    %226 = tpu.matmul %224, %225, %cst_75 {dimension_numbers = #tpu.dot_dimension_numbers<[1], [0], [0], [1], [0, 0, 1, 1], [], []>} : vector<8x16xf32>, vector<16x32xf32>, vector<8x32xf32> -> vector<8x32xf32>
    %227 = arith.addf %206, %226 : vector<8x32xf32>
    %c1_76 = arith.constant 1 : index
    %c0_77 = arith.constant 0 : index
    %c0_78 = arith.constant 0 : index
    %228 = vector.load %arg2[%c1_76, %c0_77, %c0_78] : memref<2x8x8xf32, #tpu.memory_space<vmem>>, vector<1x8x8xf32>
    %229 = vector.shape_cast %228 : vector<1x8x8xf32> to vector<8x8xf32>
    %cst_79 = arith.constant 0.000000e+00 : f32
    %230 = vector.broadcast %cst_79 : f32 to vector<8x32xf32>
    %231 = vector.extract_strided_slice %180 {offsets = [8, 0], sizes = [8, 16], strides = [1, 1]} : vector<16x128xf32> to vector<8x16xf32>
    %232 = vector.extract_strided_slice %180 {offsets = [8, 32], sizes = [8, 16], strides = [1, 1]} : vector<16x128xf32> to vector<8x16xf32>
    %233 = vector.extract_strided_slice %180 {offsets = [8, 64], sizes = [8, 16], strides = [1, 1]} : vector<16x128xf32> to vector<8x16xf32>
    %cst_80 = arith.constant dense<0.000000e+00> : vector<8x8xf32>
    %234 = tpu.matmul %231, %232, %cst_80 {dimension_numbers = #tpu.dot_dimension_numbers<[1], [1], [0], [0], [0, 0, 1, 0], [], []>} : vector<8x16xf32>, vector<8x16xf32>, vector<8x8xf32> -> vector<8x8xf32>
    %cst_81 = arith.constant 2.500000e-01 : f32
    %235 = vector.broadcast %cst_81 : f32 to vector<8x8xf32>
    %236 = arith.mulf %234, %235 : vector<8x8xf32>
    %237 = arith.addf %236, %229 : vector<8x8xf32>
    %cst_82 = arith.constant dense<0xFF800000> : vector<8xf32>
    %238 = vector.multi_reduction <maximumf>, %237, %cst_82 [1] : vector<8x8xf32> to vector<8xf32>
    %239 = vector.shape_cast %238 : vector<8xf32> to vector<8x1xf32>
    %240 = vector.broadcast %239 : vector<8x1xf32> to vector<8x8xf32>
    %241 = arith.subf %237, %240 : vector<8x8xf32>
    %242 = math.exp %241 : vector<8x8xf32>
    %cst_83 = arith.constant dense<0.000000e+00> : vector<8xf32>
    %243 = vector.multi_reduction <add>, %242, %cst_83 [1] : vector<8x8xf32> to vector<8xf32>
    %244 = vector.shape_cast %243 : vector<8xf32> to vector<8x1xf32>
    %245 = tpu.reciprocal %244 {approx = true} : vector<8x1xf32> -> vector<8x1xf32>
    %246 = vector.broadcast %245 : vector<8x1xf32> to vector<8x8xf32>
    %247 = arith.mulf %242, %246 : vector<8x8xf32>
    %cst_84 = arith.constant dense<0.000000e+00> : vector<8x16xf32>
    %248 = tpu.matmul %247, %233, %cst_84 {dimension_numbers = #tpu.dot_dimension_numbers<[1], [0], [0], [1], [0, 0, 1, 1], [], []>} : vector<8x8xf32>, vector<8x16xf32>, vector<8x16xf32> -> vector<8x16xf32>
    %249 = vector.extract_strided_slice %181 {offsets = [0, 0], sizes = [16, 32], strides = [1, 1]} : vector<32x32xf32> to vector<16x32xf32>
    %cst_85 = arith.constant dense<0.000000e+00> : vector<8x32xf32>
    %250 = tpu.matmul %248, %249, %cst_85 {dimension_numbers = #tpu.dot_dimension_numbers<[1], [0], [0], [1], [0, 0, 1, 1], [], []>} : vector<8x16xf32>, vector<16x32xf32>, vector<8x32xf32> -> vector<8x32xf32>
    %251 = arith.addf %230, %250 : vector<8x32xf32>
    %252 = vector.extract_strided_slice %180 {offsets = [8, 16], sizes = [8, 16], strides = [1, 1]} : vector<16x128xf32> to vector<8x16xf32>
    %253 = vector.extract_strided_slice %180 {offsets = [8, 48], sizes = [8, 16], strides = [1, 1]} : vector<16x128xf32> to vector<8x16xf32>
    %254 = vector.extract_strided_slice %180 {offsets = [8, 80], sizes = [8, 16], strides = [1, 1]} : vector<16x128xf32> to vector<8x16xf32>
    %cst_86 = arith.constant dense<0.000000e+00> : vector<8x8xf32>
    %255 = tpu.matmul %252, %253, %cst_86 {dimension_numbers = #tpu.dot_dimension_numbers<[1], [1], [0], [0], [0, 0, 1, 0], [], []>} : vector<8x16xf32>, vector<8x16xf32>, vector<8x8xf32> -> vector<8x8xf32>
    %cst_87 = arith.constant 2.500000e-01 : f32
    %256 = vector.broadcast %cst_87 : f32 to vector<8x8xf32>
    %257 = arith.mulf %255, %256 : vector<8x8xf32>
    %258 = arith.addf %257, %229 : vector<8x8xf32>
    %cst_88 = arith.constant dense<0xFF800000> : vector<8xf32>
    %259 = vector.multi_reduction <maximumf>, %258, %cst_88 [1] : vector<8x8xf32> to vector<8xf32>
    %260 = vector.shape_cast %259 : vector<8xf32> to vector<8x1xf32>
    %261 = vector.broadcast %260 : vector<8x1xf32> to vector<8x8xf32>
    %262 = arith.subf %258, %261 : vector<8x8xf32>
    %263 = math.exp %262 : vector<8x8xf32>
    %cst_89 = arith.constant dense<0.000000e+00> : vector<8xf32>
    %264 = vector.multi_reduction <add>, %263, %cst_89 [1] : vector<8x8xf32> to vector<8xf32>
    %265 = vector.shape_cast %264 : vector<8xf32> to vector<8x1xf32>
    %266 = tpu.reciprocal %265 {approx = true} : vector<8x1xf32> -> vector<8x1xf32>
    %267 = vector.broadcast %266 : vector<8x1xf32> to vector<8x8xf32>
    %268 = arith.mulf %263, %267 : vector<8x8xf32>
    %cst_90 = arith.constant dense<0.000000e+00> : vector<8x16xf32>
    %269 = tpu.matmul %268, %254, %cst_90 {dimension_numbers = #tpu.dot_dimension_numbers<[1], [0], [0], [1], [0, 0, 1, 1], [], []>} : vector<8x8xf32>, vector<8x16xf32>, vector<8x16xf32> -> vector<8x16xf32>
    %270 = vector.extract_strided_slice %181 {offsets = [16, 0], sizes = [16, 32], strides = [1, 1]} : vector<32x32xf32> to vector<16x32xf32>
    %cst_91 = arith.constant dense<0.000000e+00> : vector<8x32xf32>
    %271 = tpu.matmul %269, %270, %cst_91 {dimension_numbers = #tpu.dot_dimension_numbers<[1], [0], [0], [1], [0, 0, 1, 1], [], []>} : vector<8x16xf32>, vector<16x32xf32>, vector<8x32xf32> -> vector<8x32xf32>
    %272 = arith.addf %251, %271 : vector<8x32xf32>
    %273 = tpu.concatenate %227, %272 in 0 : vector<8x32xf32>, vector<8x32xf32> -> vector<16x32xf32>
    %274 = vector.broadcast %182 : vector<1x32xf32> to vector<16x32xf32>
    %275 = arith.addf %273, %274 : vector<16x32xf32>
    %276 = arith.addf %275, %171 : vector<16x32xf32>
    %277 = vector.extract_strided_slice %175 {offsets = [98, 0], sizes = [1, 32], strides = [1, 1]} : vector<104x64xf32> to vector<1x32xf32>
    %278 = vector.extract_strided_slice %175 {offsets = [99, 0], sizes = [1, 32], strides = [1, 1]} : vector<104x64xf32> to vector<1x32xf32>
    %cst_92 = arith.constant dense<0.000000e+00> : vector<16xf32>
    %279 = vector.multi_reduction <add>, %276, %cst_92 [1] : vector<16x32xf32> to vector<16xf32>
    %280 = vector.shape_cast %279 : vector<16xf32> to vector<16x1xf32>
    %cst_93 = arith.constant 3.200000e+01 : f32
    %281 = vector.broadcast %cst_93 : f32 to vector<16x1xf32>
    %282 = arith.divf %280, %281 : vector<16x1xf32>
    %283 = vector.broadcast %282 : vector<16x1xf32> to vector<16x32xf32>
    %284 = arith.subf %276, %283 : vector<16x32xf32>
    %285 = arith.mulf %284, %284 : vector<16x32xf32>
    %cst_94 = arith.constant dense<0.000000e+00> : vector<16xf32>
    %286 = vector.multi_reduction <add>, %285, %cst_94 [1] : vector<16x32xf32> to vector<16xf32>
    %287 = vector.shape_cast %286 : vector<16xf32> to vector<16x1xf32>
    %cst_95 = arith.constant 3.200000e+01 : f32
    %288 = vector.broadcast %cst_95 : f32 to vector<16x1xf32>
    %289 = arith.divf %287, %288 : vector<16x1xf32>
    %290 = vector.broadcast %282 : vector<16x1xf32> to vector<16x32xf32>
    %291 = arith.subf %276, %290 : vector<16x32xf32>
    %cst_96 = arith.constant 9.99999974E-6 : f32
    %292 = vector.broadcast %cst_96 : f32 to vector<16x1xf32>
    %293 = arith.addf %289, %292 : vector<16x1xf32>
    %294 = math.rsqrt %293 : vector<16x1xf32>
    %295 = vector.broadcast %294 : vector<16x1xf32> to vector<16x32xf32>
    %296 = arith.mulf %291, %295 : vector<16x32xf32>
    %297 = vector.broadcast %277 : vector<1x32xf32> to vector<16x32xf32>
    %298 = arith.mulf %296, %297 : vector<16x32xf32>
    %299 = vector.broadcast %278 : vector<1x32xf32> to vector<16x32xf32>
    %300 = arith.addf %298, %299 : vector<16x32xf32>
    %301 = vector.broadcast %1 : vector<16x1xf32> to vector<16x32xf32>
    %302 = arith.mulf %300, %301 : vector<16x32xf32>
    %303 = vector.extract_strided_slice %175 {offsets = [0, 0], sizes = [32, 64], strides = [1, 1]} : vector<104x64xf32> to vector<32x64xf32>
    %cst_97 = arith.constant dense<0.000000e+00> : vector<16x64xf32>
    %304 = tpu.matmul %302, %303, %cst_97 {dimension_numbers = #tpu.dot_dimension_numbers<[1], [0], [0], [1], [0, 0, 1, 1], [], []>} : vector<16x32xf32>, vector<32x64xf32>, vector<16x64xf32> -> vector<16x64xf32>
    %305 = vector.extract_strided_slice %175 {offsets = [96, 0], sizes = [1, 64], strides = [1, 1]} : vector<104x64xf32> to vector<1x64xf32>
    %306 = vector.broadcast %305 : vector<1x64xf32> to vector<16x64xf32>
    %307 = arith.addf %304, %306 : vector<16x64xf32>
    %cst_98 = arith.constant 0.000000e+00 : f32
    %308 = vector.broadcast %cst_98 : f32 to vector<16x64xf32>
    %309 = arith.maximumf %307, %308 : vector<16x64xf32>
    %310 = vector.extract_strided_slice %175 {offsets = [32, 0], sizes = [64, 32], strides = [1, 1]} : vector<104x64xf32> to vector<64x32xf32>
    %cst_99 = arith.constant dense<0.000000e+00> : vector<16x32xf32>
    %311 = tpu.matmul %309, %310, %cst_99 {dimension_numbers = #tpu.dot_dimension_numbers<[1], [0], [0], [1], [0, 0, 1, 1], [], []>} : vector<16x64xf32>, vector<64x32xf32>, vector<16x32xf32> -> vector<16x32xf32>
    %312 = vector.extract_strided_slice %175 {offsets = [97, 0], sizes = [1, 32], strides = [1, 1]} : vector<104x64xf32> to vector<1x32xf32>
    %313 = vector.broadcast %312 : vector<1x32xf32> to vector<16x32xf32>
    %314 = arith.addf %311, %313 : vector<16x32xf32>
    %315 = arith.addf %314, %302 : vector<16x32xf32>
    %316 = vector.extract_strided_slice %175 {offsets = [100, 0], sizes = [1, 32], strides = [1, 1]} : vector<104x64xf32> to vector<1x32xf32>
    %317 = vector.extract_strided_slice %175 {offsets = [101, 0], sizes = [1, 32], strides = [1, 1]} : vector<104x64xf32> to vector<1x32xf32>
    %cst_100 = arith.constant dense<0.000000e+00> : vector<16xf32>
    %318 = vector.multi_reduction <add>, %315, %cst_100 [1] : vector<16x32xf32> to vector<16xf32>
    %319 = vector.shape_cast %318 : vector<16xf32> to vector<16x1xf32>
    %cst_101 = arith.constant 3.200000e+01 : f32
    %320 = vector.broadcast %cst_101 : f32 to vector<16x1xf32>
    %321 = arith.divf %319, %320 : vector<16x1xf32>
    %322 = vector.broadcast %321 : vector<16x1xf32> to vector<16x32xf32>
    %323 = arith.subf %315, %322 : vector<16x32xf32>
    %324 = arith.mulf %323, %323 : vector<16x32xf32>
    %cst_102 = arith.constant dense<0.000000e+00> : vector<16xf32>
    %325 = vector.multi_reduction <add>, %324, %cst_102 [1] : vector<16x32xf32> to vector<16xf32>
    %326 = vector.shape_cast %325 : vector<16xf32> to vector<16x1xf32>
    %cst_103 = arith.constant 3.200000e+01 : f32
    %327 = vector.broadcast %cst_103 : f32 to vector<16x1xf32>
    %328 = arith.divf %326, %327 : vector<16x1xf32>
    %329 = vector.broadcast %321 : vector<16x1xf32> to vector<16x32xf32>
    %330 = arith.subf %315, %329 : vector<16x32xf32>
    %cst_104 = arith.constant 9.99999974E-6 : f32
    %331 = vector.broadcast %cst_104 : f32 to vector<16x1xf32>
    %332 = arith.addf %328, %331 : vector<16x1xf32>
    %333 = math.rsqrt %332 : vector<16x1xf32>
    %334 = vector.broadcast %333 : vector<16x1xf32> to vector<16x32xf32>
    %335 = arith.mulf %330, %334 : vector<16x32xf32>
    %336 = vector.broadcast %316 : vector<1x32xf32> to vector<16x32xf32>
    %337 = arith.mulf %335, %336 : vector<16x32xf32>
    %338 = vector.broadcast %317 : vector<1x32xf32> to vector<16x32xf32>
    %339 = arith.addf %337, %338 : vector<16x32xf32>
    %340 = vector.broadcast %1 : vector<16x1xf32> to vector<16x32xf32>
    %341 = arith.mulf %339, %340 : vector<16x32xf32>
    %c0_105 = arith.constant 0 : index
    %c0_106 = arith.constant 0 : index
    %342 = vector.load %arg5[%c0_105, %c0_106] : memref<32x128xf32, #tpu.memory_space<vmem>>, vector<32x128xf32>
    %cst_107 = arith.constant dense<0.000000e+00> : vector<16x128xf32>
    %343 = tpu.matmul %341, %342, %cst_107 {dimension_numbers = #tpu.dot_dimension_numbers<[1], [0], [0], [1], [0, 0, 1, 1], [], []>} : vector<16x32xf32>, vector<32x128xf32>, vector<16x128xf32> -> vector<16x128xf32>
    %c0_108 = arith.constant 0 : index
    %c0_109 = arith.constant 0 : index
    %344 = vector.load %arg6[%c0_108, %c0_109] : memref<16x128xf32, #tpu.memory_space<vmem>>, vector<16x128xf32>
    tpu.vector_store %arg6[%c0_108, %c0_109], %343 {strides = array<i32>} : memref<16x128xf32, #tpu.memory_space<vmem>>, vector<16x128xf32>,
    return
  }
}

</mosaic_0001>

<llo_original>
// kernel: tpu_custom_call.1
$region0: #{tpu_custom_call.1}
  #allocation0 [shape = 'u32[]', space=smem, size = 0x4, offset = 0x4, fixed_abs, tag = 'smem constant byte address 0x4 - core index']
  #allocation1 [shape = 'u32[72,128]{1,0:T(1,128)}', space=vmem, size = 0x9000, scoped, tag = 'internal scratch']
  %s0 = inlined_call_operand.vmem [shape: f32[16,32], index: 0, kind: input, shape index: {}]
  %s1 = inlined_call_operand.vmem [shape: f32[16,1], index: 1, kind: input, shape index: {}]
  %s2 = inlined_call_operand.vmem [shape: f32[2,8,8], index: 2, kind: input, shape index: {}]
  %s3 = inlined_call_operand.vmem [shape: f32[2,40,128], index: 3, kind: input, shape index: {}]
  %s4 = inlined_call_operand.vmem [shape: f32[2,104,64], index: 4, kind: input, shape index: {}]
  %s5 = inlined_call_operand.vmem [shape: f32[32,128], index: 5, kind: input, shape index: {}]
  %s6 = inlined_call_operand.hbm [shape: f32[16,128], index: 6, kind: output, shape index: {}]
  %s7 = sld [smem:[#allocation0]]
  $region34: #{tpu_custom_call.1} parent=0
    _
  %s9 = ssub.s32 1, %s7
  %s10 = scalar_select 0, %s9, %s7
  $region1: #{tpu_custom_call.1} parent=0
    #allocation2 [shape = 'u8[8192]{0}', space=vmem, size = 0x2000, scoped, tag = 'output window, operand 0, single buffered']
    #allocation3 [shape = 's32[1]{0}', space=sflag, size = 0x4, scoped, tag = 'scoped memory for tpu_custom_call.1']
    %11 = vsyncpa [#allocation3], 0
    // Predicated region
    $region2: #{tpu_custom_call.1} parent=1 // pred_check
      _
    $region3: #{tpu_custom_call.1} parent=1 // pred_check_branch
      %13 = sbr.rel (0) target = $region5
    $region4: #{tpu_custom_call.1} parent=1 // pred_region
      _
    $region5: #{tpu_custom_call.1} parent=1 // pred_fallthru
      _
    // Predicated region
    $region6: #{tpu_custom_call.1} parent=1 // pred_check
      _
    $region7: #{tpu_custom_call.1} parent=1 // pred_check_branch
      %15 = sbr.rel (0) target = $region9
    $region8: #{tpu_custom_call.1} parent=1 // pred_region
      _
    $region9: #{tpu_custom_call.1} parent=1 // pred_fallthru
      _
    // Predicated region
    $region10: #{tpu_custom_call.1} parent=1 // pred_check
      _
    $region11: #{tpu_custom_call.1} parent=1 // pred_check_branch
      %17 = sbr.rel (0) target = $region13
    $region12: #{tpu_custom_call.1} parent=1 // pred_region
      _
    $region13: #{tpu_custom_call.1} parent=1 // pred_fallthru
      _
    // Predicated region
    $region14: #{tpu_custom_call.1} parent=1 // pred_check
      _
    $region15: #{tpu_custom_call.1} parent=1 // pred_check_branch
      %19 = sbr.rel (0) target = $region17
    $region16: #{tpu_custom_call.1} parent=1 // pred_region
      _
    $region17: #{tpu_custom_call.1} parent=1 // pred_fallthru
      _
    // Predicated region
    $region18: #{tpu_custom_call.1} parent=1 // pred_check
      _
    $region19: #{tpu_custom_call.1} parent=1 // pred_check_branch
      %21 = sbr.rel (0) target = $region21
    $region20: #{tpu_custom_call.1} parent=1 // pred_region
      _
    $region21: #{tpu_custom_call.1} parent=1 // pred_fallthru
      _
    // Predicated region
    $region22: #{tpu_custom_call.1} parent=1 // pred_check
      _
    $region23: #{tpu_custom_call.1} parent=1 // pred_check_branch
      %23 = sbr.rel (0) target = $region25
    $region24: #{tpu_custom_call.1} parent=1 // pred_region
      _
    $region25: #{tpu_custom_call.1} parent=1 // pred_fallthru
      _
    %v24 = vld [vmem:[%s0] sm:$0xff]
    %v25 = vld [vmem:[%s0 + $0x8] sm:$0xff]
    %v26 = vld [vmem:[%s1] sm:$0xff]
    %v27 = vld [vmem:[%s1 + $0x8] sm:$0xff]
    %v28 = vld [vmem:[%s3] sm:$0xff]
    %v29 = vld [vmem:[%s3 + $0x8] sm:$0xff]
    %v30 = vld [vmem:[%s3 + $0x10] sm:$0xff]
    %v31 = vld [vmem:[%s3 + $0x18] sm:$0xff]
    %v32 = vld [vmem:[%s3 + $0x20] sm:$0xff]
    %v33 = vld [vmem:[%s4] sm:$0xff]
    %v34 = vld [vmem:[%s4 + $0x8] sm:$0xff]
    %v35 = vld [vmem:[%s4 + $0x10] sm:$0xff]
    %v36 = vld [vmem:[%s4 + $0x18] sm:$0xff]
    %v37 = vld [vmem:[%s4 + $0x20] sm:$0xff]
    %v38 = vld [vmem:[%s4 + $0x28] sm:$0xff]
    %v39 = vld [vmem:[%s4 + $0x30] sm:$0xff]
    %v40 = vld [vmem:[%s4 + $0x38] sm:$0xff]
    %v41 = vld [vmem:[%s4 + $0x40] sm:$0xff]
    %v42 = vld [vmem:[%s4 + $0x48] sm:$0xff]
    %v43 = vld [vmem:[%s4 + $0x50] sm:$0xff]
    %v44 = vld [vmem:[%s4 + $0x58] sm:$0xff]
    %v45 = vld [vmem:[%s4 + $0x60] sm:$0xff]
    %v46 = vperm.slane %v32, 0
    %vm47 = vcmask 261120
    %v49 = vsel %vm47, %v24, 0
    %v52 = vsel %vm47, %v25, 0
    %54 = vmatpush.msra.mxu0 0.0
    %55 = vmatpush.msra.mxu0 0.0
    %56 = vmatpush.msra.mxu0 0.0
    %57 = vmatpush.msra.mxu0 0.0
    %58 = vmatpush.msra.mxu0 0.0
    %59 = vmatpush.msra.mxu0 0.0
    %60 = vmatpush.msra.mxu0 0.0
    %61 = vmatpush.msra.mxu0 0.0
    %62 = vmatpush.msra.mxu0 0.0
    %63 = vmatpush.msra.mxu0 0.0
    %64 = vmatpush.msra.mxu0 0.0
    %65 = vmatpush.msra.mxu0 0.0
    %66 = vmatpush.msra.mxu0 %v31
    %67 = vmatpush.msra.mxu0 %v30
    %68 = vmatpush.msra.mxu0 %v29
    %69 = vmatpush.msra.mxu0 %v28
    %70 = vmatmul.f32.gmra.mxu0 %v49
    %v71 = vpop.f32.mrf.mxu0
    %v72 = vadd.f32 %v46, %v71
    %73 = vmatmul.f32.gmra.mxu0 %v52
    %v74 = vpop.f32.mrf.mxu0
    %v75 = vadd.f32 %v46, %v74
    %76 = vdwg.mxu0
    %v77 = vld [vmem:[%s2] sm:$0xff]
    %79 = vrot.lane.b32.xlu0 %v72, 96
    %v80 = vpop.permute.xlu0 %79
    %vm81 = vcmask 130048
    %v82 = vsel %vm81, %v72, 0
    %v84 = vsel %vm81, %v80, 0
    %86 = vmatpush.xpose.msra.mxu0 0.0
    %87 = vmatpush.xpose.msra.mxu0 0.0
    %88 = vmatpush.xpose.msra.mxu0 0.0
    %89 = vmatpush.xpose.msra.mxu0 0.0
    %90 = vmatpush.xpose.msra.mxu0 0.0
    %91 = vmatpush.xpose.msra.mxu0 0.0
    %92 = vmatpush.xpose.msra.mxu0 0.0
    %93 = vmatpush.xpose.msra.mxu0 0.0
    %94 = vmatpush.xpose.msra.mxu0 0.0
    %95 = vmatpush.xpose.msra.mxu0 0.0
    %96 = vmatpush.xpose.msra.mxu0 0.0
    %97 = vmatpush.xpose.msra.mxu0 0.0
    %98 = vmatpush.xpose.msra.mxu0 0.0
    %99 = vmatpush.xpose.msra.mxu0 0.0
    %100 = vmatpush.xpose.msra.mxu0 0.0
    %101 = vmatpush.xpose.msra.mxu0 %v84
    %102 = vmatmul.f32.gmra.mxu0 %v82
    %v103 = vpop.f32.mrf.mxu0
    %v104 = vadd.f32 0.0, %v103
    %105 = vdwg.mxu0
    %v106 = vmul.f32 %v104, 0.25
    %v107 = vadd.f32 %v106, %v77
    %vm108 = vcmask 64512
    %v109 = vsel %vm108, %v107, -inf
    %110 = vmax.xlane.f32.xlu0 %v109
    %v111 = vpop.xlane.xlu0 %110
    %v112 = vsub.f32 %v107, %v111
    %v113 = vmul.f32 %v112, 1.442695
    %v114 = vpow.pop %v113
    %v115 = vsel %vm108, %v114, 0.0
    %116 = vadd.xlane.f32.xlu0 %v115
    %v117 = vpop.xlane.xlu0 %116
    %v118 = vrcp.pop %v117
    %v119 = vmul.f32 %v114, %v118
    %120 = vrot.lane.b32.xlu0 %v72, 64
    %v121 = vpop.permute.xlu0 %120
    %v124 = vsel %vm108, %v119, 0
    %126 = vmatpush.msra.mxu0 0.0
    %127 = vmatpush.msra.mxu0 0.0
    %128 = vmatpush.msra.mxu0 0.0
    %129 = vmatpush.msra.mxu0 0.0
    %130 = vmatpush.msra.mxu0 0.0
    %131 = vmatpush.msra.mxu0 0.0
    %132 = vmatpush.msra.mxu0 0.0
    %133 = vmatpush.msra.mxu0 0.0
    %134 = vmatpush.msra.mxu0 0.0
    %135 = vmatpush.msra.mxu0 0.0
    %136 = vmatpush.msra.mxu0 0.0
    %137 = vmatpush.msra.mxu0 0.0
    %138 = vmatpush.msra.mxu0 0.0
    %139 = vmatpush.msra.mxu0 0.0
    %140 = vmatpush.msra.mxu0 0.0
    %141 = vmatpush.msra.mxu0 %v121
    %142 = vmatmul.f32.gmra.mxu0 %v124
    %v143 = vpop.f32.mrf.mxu0
    %v144 = vadd.f32 0.0, %v143
    %145 = vdwg.mxu0
    %146 = vrot.lane.b32.xlu0 %v72, 112
    %v147 = vpop.permute.xlu0 %146
    %148 = vrot.lane.b32.xlu0 %v72, 80
    %v149 = vpop.permute.xlu0 %148
    %v150 = vsel %vm81, %v147, 0
    %v152 = vsel %vm81, %v149, 0
    %154 = vmatpush.xpose.msra.mxu0 0.0
    %155 = vmatpush.xpose.msra.mxu0 0.0
    %156 = vmatpush.xpose.msra.mxu0 0.0
    %157 = vmatpush.xpose.msra.mxu0 0.0
    %158 = vmatpush.xpose.msra.mxu0 0.0
    %159 = vmatpush.xpose.msra.mxu0 0.0
    %160 = vmatpush.xpose.msra.mxu0 0.0
    %161 = vmatpush.xpose.msra.mxu0 0.0
    %162 = vmatpush.xpose.msra.mxu0 0.0
    %163 = vmatpush.xpose.msra.mxu0 0.0
    %164 = vmatpush.xpose.msra.mxu0 0.0
    %165 = vmatpush.xpose.msra.mxu0 0.0
    %166 = vmatpush.xpose.msra.mxu0 0.0
    %167 = vmatpush.xpose.msra.mxu0 0.0
    %168 = vmatpush.xpose.msra.mxu0 0.0
    %169 = vmatpush.xpose.msra.mxu0 %v152
    %170 = vmatmul.f32.gmra.mxu0 %v150
    %v171 = vpop.f32.mrf.mxu0
    %v172 = vadd.f32 0.0, %v171
    %173 = vdwg.mxu0
    %v174 = vmul.f32 %v172, 0.25
    %v175 = vadd.f32 %v174, %v77
    %v176 = vsel %vm108, %v175, -inf
    %177 = vmax.xlane.f32.xlu0 %v176
    %v178 = vpop.xlane.xlu0 %177
    %v179 = vsub.f32 %v175, %v178
    %v180 = vmul.f32 %v179, 1.442695
    %v181 = vpow.pop %v180
    %v182 = vsel %vm108, %v181, 0.0
    %183 = vadd.xlane.f32.xlu0 %v182
    %v184 = vpop.xlane.xlu0 %183
    %v185 = vrcp.pop %v184
    %v186 = vmul.f32 %v181, %v185
    %187 = vrot.lane.b32.xlu0 %v72, 48
    %v188 = vpop.permute.xlu0 %187
    %v191 = vsel %vm108, %v186, 0
    %193 = vmatpush.msra.mxu0 0.0
    %194 = vmatpush.msra.mxu0 0.0
    %195 = vmatpush.msra.mxu0 0.0
    %196 = vmatpush.msra.mxu0 0.0
    %197 = vmatpush.msra.mxu0 0.0
    %198 = vmatpush.msra.mxu0 0.0
    %199 = vmatpush.msra.mxu0 0.0
    %200 = vmatpush.msra.mxu0 0.0
    %201 = vmatpush.msra.mxu0 0.0
    %202 = vmatpush.msra.mxu0 0.0
    %203 = vmatpush.msra.mxu0 0.0
    %204 = vmatpush.msra.mxu0 0.0
    %205 = vmatpush.msra.mxu0 0.0
    %206 = vmatpush.msra.mxu0 0.0
    %207 = vmatpush.msra.mxu0 0.0
    %208 = vmatpush.msra.mxu0 %v188
    %209 = vmatmul.f32.gmra.mxu0 %v191
    %v210 = vpop.f32.mrf.mxu0
    %v211 = vadd.f32 0.0, %v210
    %212 = vdwg.mxu0
    %215 = vrot.lane.b32.xlu0 %v30, 32
    %v216 = vpop.permute.xlu0 %215
    %217 = vrot.lane.b32.xlu0 %v31, 32
    %v218 = vpop.permute.xlu0 %217
    %v222 = vsel %vm81, %v211, 0
    %224 = vmatpush.msra.mxu0 0.0
    %225 = vmatpush.msra.mxu0 0.0
    %226 = vmatpush.msra.mxu0 0.0
    %227 = vmatpush.msra.mxu0 0.0
    %228 = vmatpush.msra.mxu0 0.0
    %229 = vmatpush.msra.mxu0 0.0
    %230 = vmatpush.msra.mxu0 0.0
    %231 = vmatpush.msra.mxu0 0.0
    %232 = vmatpush.msra.mxu0 0.0
    %233 = vmatpush.msra.mxu0 0.0
    %234 = vmatpush.msra.mxu0 0.0
    %235 = vmatpush.msra.mxu0 0.0
    %236 = vmatpush.msra.mxu0 0.0
    %237 = vmatpush.msra.mxu0 0.0
    %238 = vmatpush.msra.mxu0 %v218
    %239 = vmatpush.msra.mxu0 %v216
    %240 = vmatmul.f32.gmra.mxu0 %v222
    %v241 = vpop.f32.mrf.mxu0
    %v242 = vadd.f32 0.0, %v241
    %243 = vdwg.mxu0
    %246 = vrot.lane.b32.xlu0 %v28, 32
    %v247 = vpop.permute.xlu0 %246
    %248 = vrot.lane.b32.xlu0 %v29, 32
    %v249 = vpop.permute.xlu0 %248
    %v253 = vsel %vm81, %v144, 0
    %255 = vmatpush.msra.mxu0 0.0
    %256 = vmatpush.msra.mxu0 0.0
    %257 = vmatpush.msra.mxu0 0.0
    %258 = vmatpush.msra.mxu0 0.0
    %259 = vmatpush.msra.mxu0 0.0
    %260 = vmatpush.msra.mxu0 0.0
    %261 = vmatpush.msra.mxu0 0.0
    %262 = vmatpush.msra.mxu0 0.0
    %263 = vmatpush.msra.mxu0 0.0
    %264 = vmatpush.msra.mxu0 0.0
    %265 = vmatpush.msra.mxu0 0.0
    %266 = vmatpush.msra.mxu0 0.0
    %267 = vmatpush.msra.mxu0 0.0
    %268 = vmatpush.msra.mxu0 0.0
    %269 = vmatpush.msra.mxu0 %v249
    %270 = vmatpush.msra.mxu0 %v247
    %271 = vmatmul.f32.gmra.mxu0 %v253
    %v272 = vpop.f32.mrf.mxu0
    %v273 = vadd.f32 %v242, %v272
    %274 = vdwg.mxu0
    %s275 = scalar_lea.vmem %s2, 8
    %v276 = vld [vmem:[%s275] sm:$0xff]
    %278 = vrot.lane.b32.xlu0 %v75, 96
    %v279 = vpop.permute.xlu0 %278
    %v280 = vsel %vm81, %v75, 0
    %v282 = vsel %vm81, %v279, 0
    %284 = vmatpush.xpose.msra.mxu0 0.0
    %285 = vmatpush.xpose.msra.mxu0 0.0
    %286 = vmatpush.xpose.msra.mxu0 0.0
    %287 = vmatpush.xpose.msra.mxu0 0.0
    %288 = vmatpush.xpose.msra.mxu0 0.0
    %289 = vmatpush.xpose.msra.mxu0 0.0
    %290 = vmatpush.xpose.msra.mxu0 0.0
    %291 = vmatpush.xpose.msra.mxu0 0.0
    %292 = vmatpush.xpose.msra.mxu0 0.0
    %293 = vmatpush.xpose.msra.mxu0 0.0
    %294 = vmatpush.xpose.msra.mxu0 0.0
    %295 = vmatpush.xpose.msra.mxu0 0.0
    %296 = vmatpush.xpose.msra.mxu0 0.0
    %297 = vmatpush.xpose.msra.mxu0 0.0
    %298 = vmatpush.xpose.msra.mxu0 0.0
    %299 = vmatpush.xpose.msra.mxu0 %v282
    %300 = vmatmul.f32.gmra.mxu0 %v280
    %v301 = vpop.f32.mrf.mxu0
    %v302 = vadd.f32 0.0, %v301
    %303 = vdwg.mxu0
    %v304 = vmul.f32 %v302, 0.25
    %v305 = vadd.f32 %v304, %v276
    %v306 = vsel %vm108, %v305, -inf
    %307 = vmax.xlane.f32.xlu0 %v306
    %v308 = vpop.xlane.xlu0 %307
    %v309 = vsub.f32 %v305, %v308
    %v310 = vmul.f32 %v309, 1.442695
    %v311 = vpow.pop %v310
    %v312 = vsel %vm108, %v311, 0.0
    %313 = vadd.xlane.f32.xlu0 %v312
    %v314 = vpop.xlane.xlu0 %313
    %v315 = vrcp.pop %v314
    %v316 = vmul.f32 %v311, %v315
    %317 = vrot.lane.b32.xlu0 %v75, 64
    %v318 = vpop.permute.xlu0 %317
    %v321 = vsel %vm108, %v316, 0
    %323 = vmatpush.msra.mxu0 0.0
    %324 = vmatpush.msra.mxu0 0.0
    %325 = vmatpush.msra.mxu0 0.0
    %326 = vmatpush.msra.mxu0 0.0
    %327 = vmatpush.msra.mxu0 0.0
    %328 = vmatpush.msra.mxu0 0.0
    %329 = vmatpush.msra.mxu0 0.0
    %330 = vmatpush.msra.mxu0 0.0
    %331 = vmatpush.msra.mxu0 0.0
    %332 = vmatpush.msra.mxu0 0.0
    %333 = vmatpush.msra.mxu0 0.0
    %334 = vmatpush.msra.mxu0 0.0
    %335 = vmatpush.msra.mxu0 0.0
    %336 = vmatpush.msra.mxu0 0.0
    %337 = vmatpush.msra.mxu0 0.0
    %338 = vmatpush.msra.mxu0 %v318
    %339 = vmatmul.f32.gmra.mxu0 %v321
    %v340 = vpop.f32.mrf.mxu0
    %v341 = vadd.f32 0.0, %v340
    %342 = vdwg.mxu0
    %343 = vrot.lane.b32.xlu0 %v75, 112
    %v344 = vpop.permute.xlu0 %343
    %345 = vrot.lane.b32.xlu0 %v75, 80
    %v346 = vpop.permute.xlu0 %345
    %v347 = vsel %vm81, %v344, 0
    %v349 = vsel %vm81, %v346, 0
    %351 = vmatpush.xpose.msra.mxu0 0.0
    %352 = vmatpush.xpose.msra.mxu0 0.0
    %353 = vmatpush.xpose.msra.mxu0 0.0
    %354 = vmatpush.xpose.msra.mxu0 0.0
    %355 = vmatpush.xpose.msra.mxu0 0.0
    %356 = vmatpush.xpose.msra.mxu0 0.0
    %357 = vmatpush.xpose.msra.mxu0 0.0
    %358 = vmatpush.xpose.msra.mxu0 0.0
    %359 = vmatpush.xpose.msra.mxu0 0.0
    %360 = vmatpush.xpose.msra.mxu0 0.0
    %361 = vmatpush.xpose.msra.mxu0 0.0
    %362 = vmatpush.xpose.msra.mxu0 0.0
    %363 = vmatpush.xpose.msra.mxu0 0.0
    %364 = vmatpush.xpose.msra.mxu0 0.0
    %365 = vmatpush.xpose.msra.mxu0 0.0
    %366 = vmatpush.xpose.msra.mxu0 %v349
    %367 = vmatmul.f32.gmra.mxu0 %v347
    %v368 = vpop.f32.mrf.mxu0
    %v369 = vadd.f32 0.0, %v368
    %370 = vdwg.mxu0
    %v371 = vmul.f32 %v369, 0.25
    %v372 = vadd.f32 %v371, %v276
    %v373 = vsel %vm108, %v372, -inf
    %374 = vmax.xlane.f32.xlu0 %v373
    %v375 = vpop.xlane.xlu0 %374
    %v376 = vsub.f32 %v372, %v375
    %v377 = vmul.f32 %v376, 1.442695
    %v378 = vpow.pop %v377
    %v379 = vsel %vm108, %v378, 0.0
    %380 = vadd.xlane.f32.xlu0 %v379
    %v381 = vpop.xlane.xlu0 %380
    %v382 = vrcp.pop %v381
    %v383 = vmul.f32 %v378, %v382
    %384 = vrot.lane.b32.xlu0 %v75, 48
    %v385 = vpop.permute.xlu0 %384
    %v388 = vsel %vm108, %v383, 0
    %390 = vmatpush.msra.mxu0 0.0
    %391 = vmatpush.msra.mxu0 0.0
    %392 = vmatpush.msra.mxu0 0.0
    %393 = vmatpush.msra.mxu0 0.0
    %394 = vmatpush.msra.mxu0 0.0
    %395 = vmatpush.msra.mxu0 0.0
    %396 = vmatpush.msra.mxu0 0.0
    %397 = vmatpush.msra.mxu0 0.0
    %398 = vmatpush.msra.mxu0 0.0
    %399 = vmatpush.msra.mxu0 0.0
    %400 = vmatpush.msra.mxu0 0.0
    %401 = vmatpush.msra.mxu0 0.0
    %402 = vmatpush.msra.mxu0 0.0
    %403 = vmatpush.msra.mxu0 0.0
    %404 = vmatpush.msra.mxu0 0.0
    %405 = vmatpush.msra.mxu0 %v385
    %406 = vmatmul.f32.gmra.mxu0 %v388
    %v407 = vpop.f32.mrf.mxu0
    %v408 = vadd.f32 0.0, %v407
    %409 = vdwg.mxu0
    %v411 = vsel %vm81, %v408, 0
    %413 = vmatpush.msra.mxu0 0.0
    %414 = vmatpush.msra.mxu0 0.0
    %415 = vmatpush.msra.mxu0 0.0
    %416 = vmatpush.msra.mxu0 0.0
    %417 = vmatpush.msra.mxu0 0.0
    %418 = vmatpush.msra.mxu0 0.0
    %419 = vmatpush.msra.mxu0 0.0
    %420 = vmatpush.msra.mxu0 0.0
    %421 = vmatpush.msra.mxu0 0.0
    %422 = vmatpush.msra.mxu0 0.0
    %423 = vmatpush.msra.mxu0 0.0
    %424 = vmatpush.msra.mxu0 0.0
    %425 = vmatpush.msra.mxu0 0.0
    %426 = vmatpush.msra.mxu0 0.0
    %427 = vmatpush.msra.mxu0 %v218
    %428 = vmatpush.msra.mxu0 %v216
    %429 = vmatmul.f32.gmra.mxu0 %v411
    %v430 = vpop.f32.mrf.mxu0
    %v431 = vadd.f32 0.0, %v430
    %432 = vdwg.mxu0
    %v434 = vsel %vm81, %v341, 0
    %436 = vmatpush.msra.mxu0 0.0
    %437 = vmatpush.msra.mxu0 0.0
    %438 = vmatpush.msra.mxu0 0.0
    %439 = vmatpush.msra.mxu0 0.0
    %440 = vmatpush.msra.mxu0 0.0
    %441 = vmatpush.msra.mxu0 0.0
    %442 = vmatpush.msra.mxu0 0.0
    %443 = vmatpush.msra.mxu0 0.0
    %444 = vmatpush.msra.mxu0 0.0
    %445 = vmatpush.msra.mxu0 0.0
    %446 = vmatpush.msra.mxu0 0.0
    %447 = vmatpush.msra.mxu0 0.0
    %448 = vmatpush.msra.mxu0 0.0
    %449 = vmatpush.msra.mxu0 0.0
    %450 = vmatpush.msra.mxu0 %v249
    %451 = vmatpush.msra.mxu0 %v247
    %452 = vmatmul.f32.gmra.mxu0 %v434
    %v453 = vpop.f32.mrf.mxu0
    %v454 = vadd.f32 %v431, %v453
    %455 = vdwg.mxu0
    %457 = vrot.lane.b32.xlu0 %v46, 32
    %v458 = vpop.permute.xlu0 %457
    %v460 = vadd.f32 %v273, %v458
    %v461 = vadd.f32 %v454, %v458
    %v462 = vadd.f32 %v460, %v24
    %v463 = vadd.f32 %v461, %v25
    %v464 = vsel %vm47, %v462, 0.0
    %465 = vadd.xlane.f32.xlu0 %v464
    %v466 = vpop.xlane.xlu0 %465
    %v467 = vsel %vm47, %v463, 0.0
    %468 = vadd.xlane.f32.xlu0 %v467
    %v469 = vpop.xlane.xlu0 %468
    %v470 = vrcp.pop 32.0
    %v471 = vmul.f32 32.0, %v470
    %v472 = vsub.f32 1.0, %v471
    %v473 = vmul.f32 %v470, %v472
    %v474 = vadd.f32 %v470, %v473
    %vm475 = vweird.f32 %v470
    %v476 = vsel %vm475, %v470, %v474
    %v477 = vmul.f32 %v466, %v476
    %v478 = vmul.f32 %v469, %v476
    %v479 = vsub.f32 %v462, %v477
    %v480 = vsub.f32 %v463, %v478
    %v481 = vmul.f32 %v479, %v479
    %v482 = vmul.f32 %v480, %v480
    %v483 = vsel %vm47, %v481, 0.0
    %484 = vadd.xlane.f32.xlu0 %v483
    %v485 = vpop.xlane.xlu0 %484
    %v486 = vsel %vm47, %v482, 0.0
    %487 = vadd.xlane.f32.xlu0 %v486
    %v488 = vpop.xlane.xlu0 %487
    %v489 = vmul.f32 %v485, %v476
    %v490 = vmul.f32 %v488, %v476
    %v491 = vadd.f32 %v489, 1e-05
    %v492 = vadd.f32 %v490, 1e-05
    %v493 = vrsqrt.pop %v491
    %v494 = vmul.f32 %v493, %v491
    %v495 = vmul.f32 %v494, %v493
    %v496 = vmul.f32 0.5, %v495
    %v497 = vsub.f32 1.5, %v496
    %v498 = vmul.f32 %v493, %v497
    %vm499 = vweird.f32 %v491
    %vm500 = vweird.f32 %v493
    %vm501 = vmor %vm499, %vm500
    %v502 = vsel %vm501, %v493, %v498
    %v503 = vrsqrt.pop %v492
    %v504 = vmul.f32 %v503, %v492
    %v505 = vmul.f32 %v504, %v503
    %v506 = vmul.f32 0.5, %v505
    %v507 = vsub.f32 1.5, %v506
    %v508 = vmul.f32 %v503, %v507
    %vm509 = vweird.f32 %v492
    %vm510 = vweird.f32 %v503
    %vm511 = vmor %vm509, %vm510
    %v512 = vsel %vm511, %v503, %v508
    %v513 = vmul.f32 %v479, %v502
    %v514 = vmul.f32 %v480, %v512
    %v515 = vperm.slane %v45, 2
    %v516 = vmul.f32 %v513, %v515
    %v517 = vmul.f32 %v514, %v515
    %v518 = vperm.slane %v45, 3
    %v519 = vadd.f32 %v516, %v518
    %v520 = vadd.f32 %v517, %v518
    %522 = vset.pattern.permute.xlu0 0
    %523 = vperm.xlu0 %522, %v26
    %v524 = vpop.permute.xlu0 %523
    %527 = vset.pattern.permute.xlu0 0
    %528 = vperm.xlu0 %527, %v27
    %v529 = vpop.permute.xlu0 %528
    %v531 = vmul.f32 %v519, %v524
    %v532 = vmul.f32 %v520, %v529
    %v533 = vperm.slane %v45, 0
    %v535 = vsel %vm47, %v531, 0
    %v538 = vsel %vm47, %v532, 0
    %540 = vmatpush.msra.mxu0 0.0
    %541 = vmatpush.msra.mxu0 0.0
    %542 = vmatpush.msra.mxu0 0.0
    %543 = vmatpush.msra.mxu0 0.0
    %544 = vmatpush.msra.mxu0 0.0
    %545 = vmatpush.msra.mxu0 0.0
    %546 = vmatpush.msra.mxu0 0.0
    %547 = vmatpush.msra.mxu0 0.0
    %548 = vmatpush.msra.mxu0 0.0
    %549 = vmatpush.msra.mxu0 0.0
    %550 = vmatpush.msra.mxu0 0.0
    %551 = vmatpush.msra.mxu0 0.0
    %552 = vmatpush.msra.mxu0 %v36
    %553 = vmatpush.msra.mxu0 %v35
    %554 = vmatpush.msra.mxu0 %v34
    %555 = vmatpush.msra.mxu0 %v33
    %556 = vmatmul.f32.gmra.mxu0 %v535
    %v557 = vpop.f32.mrf.mxu0
    %v558 = vadd.f32 %v533, %v557
    %559 = vmatmul.f32.gmra.mxu0 %v538
    %v560 = vpop.f32.mrf.mxu0
    %v561 = vadd.f32 %v533, %v560
    %562 = vdwg.mxu0
    %v563 = vmax.f32 %v558, 0.0
    %v564 = vmax.f32 %v561, 0.0
    %v565 = vperm.slane %v45, 1
    %vm566 = vcmask 523264
    %v568 = vsel %vm566, %v563, 0
    %v571 = vsel %vm566, %v564, 0
    %573 = vmatpush.msra.mxu0 0.0
    %574 = vmatpush.msra.mxu0 0.0
    %575 = vmatpush.msra.mxu0 0.0
    %576 = vmatpush.msra.mxu0 0.0
    %577 = vmatpush.msra.mxu0 0.0
    %578 = vmatpush.msra.mxu0 0.0
    %579 = vmatpush.msra.mxu0 0.0
    %580 = vmatpush.msra.mxu0 0.0
    %581 = vmatpush.msra.mxu0 %v44
    %582 = vmatpush.msra.mxu0 %v43
    %583 = vmatpush.msra.mxu0 %v42
    %584 = vmatpush.msra.mxu0 %v41
    %585 = vmatpush.msra.mxu0 %v40
    %586 = vmatpush.msra.mxu0 %v39
    %587 = vmatpush.msra.mxu0 %v38
    %588 = vmatpush.msra.mxu0 %v37
    %589 = vmatmul.f32.gmra.mxu0 %v568
    %v590 = vpop.f32.mrf.mxu0
    %v591 = vadd.f32 %v565, %v590
    %592 = vmatmul.f32.gmra.mxu0 %v571
    %v593 = vpop.f32.mrf.mxu0
    %v594 = vadd.f32 %v565, %v593
    %595 = vdwg.mxu0
    %v596 = vadd.f32 %v591, %v531
    %v597 = vadd.f32 %v594, %v532
    %v598 = vsel %vm47, %v596, 0.0
    %599 = vadd.xlane.f32.xlu0 %v598
    %v600 = vpop.xlane.xlu0 %599
    %v601 = vsel %vm47, %v597, 0.0
    %602 = vadd.xlane.f32.xlu0 %v601
    %v603 = vpop.xlane.xlu0 %602
    %v604 = vmul.f32 %v600, %v476
    %v605 = vmul.f32 %v603, %v476
    %v606 = vsub.f32 %v596, %v604
    %v607 = vsub.f32 %v597, %v605
    %v608 = vmul.f32 %v606, %v606
    %v609 = vmul.f32 %v607, %v607
    %v610 = vsel %vm47, %v608, 0.0
    %611 = vadd.xlane.f32.xlu0 %v610
    %v612 = vpop.xlane.xlu0 %611
    %v613 = vsel %vm47, %v609, 0.0
    %614 = vadd.xlane.f32.xlu0 %v613
    %v615 = vpop.xlane.xlu0 %614
    %v616 = vmul.f32 %v612, %v476
    %v617 = vmul.f32 %v615, %v476
    %v618 = vadd.f32 %v616, 1e-05
    %v619 = vadd.f32 %v617, 1e-05
    %v620 = vrsqrt.pop %v618
    %v621 = vmul.f32 %v620, %v618
    %v622 = vmul.f32 %v621, %v620
    %v623 = vmul.f32 0.5, %v622
    %v624 = vsub.f32 1.5, %v623
    %v625 = vmul.f32 %v620, %v624
    %vm626 = vweird.f32 %v618
    %vm627 = vweird.f32 %v620
    %vm628 = vmor %vm626, %vm627
    %v629 = vsel %vm628, %v620, %v625
    %v630 = vrsqrt.pop %v619
    %v631 = vmul.f32 %v630, %v619
    %v632 = vmul.f32 %v631, %v630
    %v633 = vmul.f32 0.5, %v632
    %v634 = vsub.f32 1.5, %v633
    %v635 = vmul.f32 %v630, %v634
    %vm636 = vweird.f32 %v619
    %vm637 = vweird.f32 %v630
    %vm638 = vmor %vm636, %vm637
    %v639 = vsel %vm638, %v630, %v635
    %v640 = vmul.f32 %v606, %v629
    %v641 = vmul.f32 %v607, %v639
    %v642 = vperm.slane %v45, 4
    %v643 = vmul.f32 %v640, %v642
    %v644 = vmul.f32 %v641, %v642
    %v645 = vperm.slane %v45, 5
    %v646 = vadd.f32 %v643, %v645
    %v647 = vadd.f32 %v644, %v645
    %v648 = vmul.f32 %v646, %v524
    %v649 = vmul.f32 %v647, %v529
    %s650 = scalar_lea.vmem %s3, 40
    %v651 = vld [vmem:[%s650] sm:$0xff]
    %v652 = vld [vmem:[%s650 + $0x8] sm:$0xff]
    %v653 = vld [vmem:[%s650 + $0x10] sm:$0xff]
    %v654 = vld [vmem:[%s650 + $0x18] sm:$0xff]
    %v655 = vld [vmem:[%s650 + $0x20] sm:$0xff]
    %s656 = scalar_lea.vmem %s4, 104
    %v657 = vld [vmem:[%s656] sm:$0xff]
    %v658 = vld [vmem:[%s656 + $0x8] sm:$0xff]
    %v659 = vld [vmem:[%s656 + $0x10] sm:$0xff]
    %v660 = vld [vmem:[%s656 + $0x18] sm:$0xff]
    %v661 = vld [vmem:[%s656 + $0x20] sm:$0xff]
    %v662 = vld [vmem:[%s656 + $0x28] sm:$0xff]
    %v663 = vld [vmem:[%s656 + $0x30] sm:$0xff]
    %v664 = vld [vmem:[%s656 + $0x38] sm:$0xff]
    %v665 = vld [vmem:[%s656 + $0x40] sm:$0xff]
    %v666 = vld [vmem:[%s656 + $0x48] sm:$0xff]
    %v667 = vld [vmem:[%s656 + $0x50] sm:$0xff]
    %v668 = vld [vmem:[%s656 + $0x58] sm:$0xff]
    %v669 = vld [vmem:[%s656 + $0x60] sm:$0xff]
    %v670 = vperm.slane %v655, 0
    %v672 = vsel %vm47, %v648, 0
    %v675 = vsel %vm47, %v649, 0
    %677 = vmatpush.msra.mxu0 0.0
    %678 = vmatpush.msra.mxu0 0.0
    %679 = vmatpush.msra.mxu0 0.0
    %680 = vmatpush.msra.mxu0 0.0
    %681 = vmatpush.msra.mxu0 0.0
    %682 = vmatpush.msra.mxu0 0.0
    %683 = vmatpush.msra.mxu0 0.0
    %684 = vmatpush.msra.mxu0 0.0
    %685 = vmatpush.msra.mxu0 0.0
    %686 = vmatpush.msra.mxu0 0.0
    %687 = vmatpush.msra.mxu0 0.0
    %688 = vmatpush.msra.mxu0 0.0
    %689 = vmatpush.msra.mxu0 %v654
    %690 = vmatpush.msra.mxu0 %v653
    %691 = vmatpush.msra.mxu0 %v652
    %692 = vmatpush.msra.mxu0 %v651
    %693 = vmatmul.f32.gmra.mxu0 %v672
    %v694 = vpop.f32.mrf.mxu0
    %v695 = vadd.f32 %v670, %v694
    %696 = vmatmul.f32.gmra.mxu0 %v675
    %v697 = vpop.f32.mrf.mxu0
    %v698 = vadd.f32 %v670, %v697
    %699 = vdwg.mxu0
    %701 = vrot.lane.b32.xlu0 %v695, 96
    %v702 = vpop.permute.xlu0 %701
    %v703 = vsel %vm81, %v695, 0
    %v705 = vsel %vm81, %v702, 0
    %707 = vmatpush.xpose.msra.mxu0 0.0
    %708 = vmatpush.xpose.msra.mxu0 0.0
    %709 = vmatpush.xpose.msra.mxu0 0.0
    %710 = vmatpush.xpose.msra.mxu0 0.0
    %711 = vmatpush.xpose.msra.mxu0 0.0
    %712 = vmatpush.xpose.msra.mxu0 0.0
    %713 = vmatpush.xpose.msra.mxu0 0.0
    %714 = vmatpush.xpose.msra.mxu0 0.0
    %715 = vmatpush.xpose.msra.mxu0 0.0
    %716 = vmatpush.xpose.msra.mxu0 0.0
    %717 = vmatpush.xpose.msra.mxu0 0.0
    %718 = vmatpush.xpose.msra.mxu0 0.0
    %719 = vmatpush.xpose.msra.mxu0 0.0
    %720 = vmatpush.xpose.msra.mxu0 0.0
    %721 = vmatpush.xpose.msra.mxu0 0.0
    %722 = vmatpush.xpose.msra.mxu0 %v705
    %723 = vmatmul.f32.gmra.mxu0 %v703
    %v724 = vpop.f32.mrf.mxu0
    %v725 = vadd.f32 0.0, %v724
    %726 = vdwg.mxu0
    %v727 = vmul.f32 %v725, 0.25
    %v728 = vadd.f32 %v727, %v77
    %v729 = vsel %vm108, %v728, -inf
    %730 = vmax.xlane.f32.xlu0 %v729
    %v731 = vpop.xlane.xlu0 %730
    %v732 = vsub.f32 %v728, %v731
    %v733 = vmul.f32 %v732, 1.442695
    %v734 = vpow.pop %v733
    %v735 = vsel %vm108, %v734, 0.0
    %736 = vadd.xlane.f32.xlu0 %v735
    %v737 = vpop.xlane.xlu0 %736
    %v738 = vrcp.pop %v737
    %v739 = vmul.f32 %v734, %v738
    %740 = vrot.lane.b32.xlu0 %v695, 64
    %v741 = vpop.permute.xlu0 %740
    %v744 = vsel %vm108, %v739, 0
    %746 = vmatpush.msra.mxu0 0.0
    %747 = vmatpush.msra.mxu0 0.0
    %748 = vmatpush.msra.mxu0 0.0
    %749 = vmatpush.msra.mxu0 0.0
    %750 = vmatpush.msra.mxu0 0.0
    %751 = vmatpush.msra.mxu0 0.0
    %752 = vmatpush.msra.mxu0 0.0
    %753 = vmatpush.msra.mxu0 0.0
    %754 = vmatpush.msra.mxu0 0.0
    %755 = vmatpush.msra.mxu0 0.0
    %756 = vmatpush.msra.mxu0 0.0
    %757 = vmatpush.msra.mxu0 0.0
    %758 = vmatpush.msra.mxu0 0.0
    %759 = vmatpush.msra.mxu0 0.0
    %760 = vmatpush.msra.mxu0 0.0
    %761 = vmatpush.msra.mxu0 %v741
    %762 = vmatmul.f32.gmra.mxu0 %v744
    %v763 = vpop.f32.mrf.mxu0
    %v764 = vadd.f32 0.0, %v763
    %765 = vdwg.mxu0
    %766 = vrot.lane.b32.xlu0 %v695, 112
    %v767 = vpop.permute.xlu0 %766
    %768 = vrot.lane.b32.xlu0 %v695, 80
    %v769 = vpop.permute.xlu0 %768
    %v770 = vsel %vm81, %v767, 0
    %v772 = vsel %vm81, %v769, 0
    %774 = vmatpush.xpose.msra.mxu0 0.0
    %775 = vmatpush.xpose.msra.mxu0 0.0
    %776 = vmatpush.xpose.msra.mxu0 0.0
    %777 = vmatpush.xpose.msra.mxu0 0.0
    %778 = vmatpush.xpose.msra.mxu0 0.0
    %779 = vmatpush.xpose.msra.mxu0 0.0
    %780 = vmatpush.xpose.msra.mxu0 0.0
    %781 = vmatpush.xpose.msra.mxu0 0.0
    %782 = vmatpush.xpose.msra.mxu0 0.0
    %783 = vmatpush.xpose.msra.mxu0 0.0
    %784 = vmatpush.xpose.msra.mxu0 0.0
    %785 = vmatpush.xpose.msra.mxu0 0.0
    %786 = vmatpush.xpose.msra.mxu0 0.0
    %787 = vmatpush.xpose.msra.mxu0 0.0
    %788 = vmatpush.xpose.msra.mxu0 0.0
    %789 = vmatpush.xpose.msra.mxu0 %v772
    %790 = vmatmul.f32.gmra.mxu0 %v770
    %v791 = vpop.f32.mrf.mxu0
    %v792 = vadd.f32 0.0, %v791
    %793 = vdwg.mxu0
    %v794 = vmul.f32 %v792, 0.25
    %v795 = vadd.f32 %v794, %v77
    %v796 = vsel %vm108, %v795, -inf
    %797 = vmax.xlane.f32.xlu0 %v796
    %v798 = vpop.xlane.xlu0 %797
    %v799 = vsub.f32 %v795, %v798
    %v800 = vmul.f32 %v799, 1.442695
    %v801 = vpow.pop %v800
    %v802 = vsel %vm108, %v801, 0.0
    %803 = vadd.xlane.f32.xlu0 %v802
    %v804 = vpop.xlane.xlu0 %803
    %v805 = vrcp.pop %v804
    %v806 = vmul.f32 %v801, %v805
    %807 = vrot.lane.b32.xlu0 %v695, 48
    %v808 = vpop.permute.xlu0 %807
    %v811 = vsel %vm108, %v806, 0
    %813 = vmatpush.msra.mxu0 0.0
    %814 = vmatpush.msra.mxu0 0.0
    %815 = vmatpush.msra.mxu0 0.0
    %816 = vmatpush.msra.mxu0 0.0
    %817 = vmatpush.msra.mxu0 0.0
    %818 = vmatpush.msra.mxu0 0.0
    %819 = vmatpush.msra.mxu0 0.0
    %820 = vmatpush.msra.mxu0 0.0
    %821 = vmatpush.msra.mxu0 0.0
    %822 = vmatpush.msra.mxu0 0.0
    %823 = vmatpush.msra.mxu0 0.0
    %824 = vmatpush.msra.mxu0 0.0
    %825 = vmatpush.msra.mxu0 0.0
    %826 = vmatpush.msra.mxu0 0.0
    %827 = vmatpush.msra.mxu0 0.0
    %828 = vmatpush.msra.mxu0 %v808
    %829 = vmatmul.f32.gmra.mxu0 %v811
    %v830 = vpop.f32.mrf.mxu0
    %v831 = vadd.f32 0.0, %v830
    %832 = vdwg.mxu0
    %835 = vrot.lane.b32.xlu0 %v653, 32
    %v836 = vpop.permute.xlu0 %835
    %837 = vrot.lane.b32.xlu0 %v654, 32
    %v838 = vpop.permute.xlu0 %837
    %v842 = vsel %vm81, %v831, 0
    %844 = vmatpush.msra.mxu0 0.0
    %845 = vmatpush.msra.mxu0 0.0
    %846 = vmatpush.msra.mxu0 0.0
    %847 = vmatpush.msra.mxu0 0.0
    %848 = vmatpush.msra.mxu0 0.0
    %849 = vmatpush.msra.mxu0 0.0
    %850 = vmatpush.msra.mxu0 0.0
    %851 = vmatpush.msra.mxu0 0.0
    %852 = vmatpush.msra.mxu0 0.0
    %853 = vmatpush.msra.mxu0 0.0
    %854 = vmatpush.msra.mxu0 0.0
    %855 = vmatpush.msra.mxu0 0.0
    %856 = vmatpush.msra.mxu0 0.0
    %857 = vmatpush.msra.mxu0 0.0
    %858 = vmatpush.msra.mxu0 %v838
    %859 = vmatpush.msra.mxu0 %v836
    %860 = vmatmul.f32.gmra.mxu0 %v842
    %v861 = vpop.f32.mrf.mxu0
    %v862 = vadd.f32 0.0, %v861
    %863 = vdwg.mxu0
    %866 = vrot.lane.b32.xlu0 %v651, 32
    %v867 = vpop.permute.xlu0 %866
    %868 = vrot.lane.b32.xlu0 %v652, 32
    %v869 = vpop.permute.xlu0 %868
    %v873 = vsel %vm81, %v764, 0
    %875 = vmatpush.msra.mxu0 0.0
    %876 = vmatpush.msra.mxu0 0.0
    %877 = vmatpush.msra.mxu0 0.0
    %878 = vmatpush.msra.mxu0 0.0
    %879 = vmatpush.msra.mxu0 0.0
    %880 = vmatpush.msra.mxu0 0.0
    %881 = vmatpush.msra.mxu0 0.0
    %882 = vmatpush.msra.mxu0 0.0
    %883 = vmatpush.msra.mxu0 0.0
    %884 = vmatpush.msra.mxu0 0.0
    %885 = vmatpush.msra.mxu0 0.0
    %886 = vmatpush.msra.mxu0 0.0
    %887 = vmatpush.msra.mxu0 0.0
    %888 = vmatpush.msra.mxu0 0.0
    %889 = vmatpush.msra.mxu0 %v869
    %890 = vmatpush.msra.mxu0 %v867
    %891 = vmatmul.f32.gmra.mxu0 %v873
    %v892 = vpop.f32.mrf.mxu0
    %v893 = vadd.f32 %v862, %v892
    %894 = vdwg.mxu0
    %896 = vrot.lane.b32.xlu0 %v698, 96
    %v897 = vpop.permute.xlu0 %896
    %v898 = vsel %vm81, %v698, 0
    %v900 = vsel %vm81, %v897, 0
    %902 = vmatpush.xpose.msra.mxu0 0.0
    %903 = vmatpush.xpose.msra.mxu0 0.0
    %904 = vmatpush.xpose.msra.mxu0 0.0
    %905 = vmatpush.xpose.msra.mxu0 0.0
    %906 = vmatpush.xpose.msra.mxu0 0.0
    %907 = vmatpush.xpose.msra.mxu0 0.0
    %908 = vmatpush.xpose.msra.mxu0 0.0
    %909 = vmatpush.xpose.msra.mxu0 0.0
    %910 = vmatpush.xpose.msra.mxu0 0.0
    %911 = vmatpush.xpose.msra.mxu0 0.0
    %912 = vmatpush.xpose.msra.mxu0 0.0
    %913 = vmatpush.xpose.msra.mxu0 0.0
    %914 = vmatpush.xpose.msra.mxu0 0.0
    %915 = vmatpush.xpose.msra.mxu0 0.0
    %916 = vmatpush.xpose.msra.mxu0 0.0
    %917 = vmatpush.xpose.msra.mxu0 %v900
    %918 = vmatmul.f32.gmra.mxu0 %v898
    %v919 = vpop.f32.mrf.mxu0
    %v920 = vadd.f32 0.0, %v919
    %921 = vdwg.mxu0
    %v922 = vmul.f32 %v920, 0.25
    %v923 = vadd.f32 %v922, %v276
    %v924 = vsel %vm108, %v923, -inf
    %925 = vmax.xlane.f32.xlu0 %v924
    %v926 = vpop.xlane.xlu0 %925
    %v927 = vsub.f32 %v923, %v926
    %v928 = vmul.f32 %v927, 1.442695
    %v929 = vpow.pop %v928
    %v930 = vsel %vm108, %v929, 0.0
    %931 = vadd.xlane.f32.xlu0 %v930
    %v932 = vpop.xlane.xlu0 %931
    %v933 = vrcp.pop %v932
    %v934 = vmul.f32 %v929, %v933
    %935 = vrot.lane.b32.xlu0 %v698, 64
    %v936 = vpop.permute.xlu0 %935
    %v939 = vsel %vm108, %v934, 0
    %941 = vmatpush.msra.mxu0 0.0
    %942 = vmatpush.msra.mxu0 0.0
    %943 = vmatpush.msra.mxu0 0.0
    %944 = vmatpush.msra.mxu0 0.0
    %945 = vmatpush.msra.mxu0 0.0
    %946 = vmatpush.msra.mxu0 0.0
    %947 = vmatpush.msra.mxu0 0.0
    %948 = vmatpush.msra.mxu0 0.0
    %949 = vmatpush.msra.mxu0 0.0
    %950 = vmatpush.msra.mxu0 0.0
    %951 = vmatpush.msra.mxu0 0.0
    %952 = vmatpush.msra.mxu0 0.0
    %953 = vmatpush.msra.mxu0 0.0
    %954 = vmatpush.msra.mxu0 0.0
    %955 = vmatpush.msra.mxu0 0.0
    %956 = vmatpush.msra.mxu0 %v936
    %957 = vmatmul.f32.gmra.mxu0 %v939
    %v958 = vpop.f32.mrf.mxu0
    %v959 = vadd.f32 0.0, %v958
    %960 = vdwg.mxu0
    %961 = vrot.lane.b32.xlu0 %v698, 112
    %v962 = vpop.permute.xlu0 %961
    %963 = vrot.lane.b32.xlu0 %v698, 80
    %v964 = vpop.permute.xlu0 %963
    %v965 = vsel %vm81, %v962, 0
    %v967 = vsel %vm81, %v964, 0
    %969 = vmatpush.xpose.msra.mxu0 0.0
    %970 = vmatpush.xpose.msra.mxu0 0.0
    %971 = vmatpush.xpose.msra.mxu0 0.0
    %972 = vmatpush.xpose.msra.mxu0 0.0
    %973 = vmatpush.xpose.msra.mxu0 0.0
    %974 = vmatpush.xpose.msra.mxu0 0.0
    %975 = vmatpush.xpose.msra.mxu0 0.0
    %976 = vmatpush.xpose.msra.mxu0 0.0
    %977 = vmatpush.xpose.msra.mxu0 0.0
    %978 = vmatpush.xpose.msra.mxu0 0.0
    %979 = vmatpush.xpose.msra.mxu0 0.0
    %980 = vmatpush.xpose.msra.mxu0 0.0
    %981 = vmatpush.xpose.msra.mxu0 0.0
    %982 = vmatpush.xpose.msra.mxu0 0.0
    %983 = vmatpush.xpose.msra.mxu0 0.0
    %984 = vmatpush.xpose.msra.mxu0 %v967
    %985 = vmatmul.f32.gmra.mxu0 %v965
    %v986 = vpop.f32.mrf.mxu0
    %v987 = vadd.f32 0.0, %v986
    %988 = vdwg.mxu0
    %v989 = vmul.f32 %v987, 0.25
    %v990 = vadd.f32 %v989, %v276
    %v991 = vsel %vm108, %v990, -inf
    %992 = vmax.xlane.f32.xlu0 %v991
    %v993 = vpop.xlane.xlu0 %992
    %v994 = vsub.f32 %v990, %v993
    %v995 = vmul.f32 %v994, 1.442695
    %v996 = vpow.pop %v995
    %v997 = vsel %vm108, %v996, 0.0
    %998 = vadd.xlane.f32.xlu0 %v997
    %v999 = vpop.xlane.xlu0 %998
    %v1000 = vrcp.pop %v999
    %v1001 = vmul.f32 %v996, %v1000
    %1002 = vrot.lane.b32.xlu0 %v698, 48
    %v1003 = vpop.permute.xlu0 %1002
    %v1006 = vsel %vm108, %v1001, 0
    %1008 = vmatpush.msra.mxu0 0.0
    %1009 = vmatpush.msra.mxu0 0.0
    %1010 = vmatpush.msra.mxu0 0.0
    %1011 = vmatpush.msra.mxu0 0.0
    %1012 = vmatpush.msra.mxu0 0.0
    %1013 = vmatpush.msra.mxu0 0.0
    %1014 = vmatpush.msra.mxu0 0.0
    %1015 = vmatpush.msra.mxu0 0.0
    %1016 = vmatpush.msra.mxu0 0.0
    %1017 = vmatpush.msra.mxu0 0.0
    %1018 = vmatpush.msra.mxu0 0.0
    %1019 = vmatpush.msra.mxu0 0.0
    %1020 = vmatpush.msra.mxu0 0.0
    %1021 = vmatpush.msra.mxu0 0.0
    %1022 = vmatpush.msra.mxu0 0.0
    %1023 = vmatpush.msra.mxu0 %v1003
    %1024 = vmatmul.f32.gmra.mxu0 %v1006
    %v1025 = vpop.f32.mrf.mxu0
    %v1026 = vadd.f32 0.0, %v1025
    %1027 = vdwg.mxu0
    %v1029 = vsel %vm81, %v1026, 0
    %1031 = vmatpush.msra.mxu0 0.0
    %1032 = vmatpush.msra.mxu0 0.0
    %1033 = vmatpush.msra.mxu0 0.0
    %1034 = vmatpush.msra.mxu0 0.0
    %1035 = vmatpush.msra.mxu0 0.0
    %1036 = vmatpush.msra.mxu0 0.0
    %1037 = vmatpush.msra.mxu0 0.0
    %1038 = vmatpush.msra.mxu0 0.0
    %1039 = vmatpush.msra.mxu0 0.0
    %1040 = vmatpush.msra.mxu0 0.0
    %1041 = vmatpush.msra.mxu0 0.0
    %1042 = vmatpush.msra.mxu0 0.0
    %1043 = vmatpush.msra.mxu0 0.0
    %1044 = vmatpush.msra.mxu0 0.0
    %1045 = vmatpush.msra.mxu0 %v838
    %1046 = vmatpush.msra.mxu0 %v836
    %1047 = vmatmul.f32.gmra.mxu0 %v1029
    %v1048 = vpop.f32.mrf.mxu0
    %v1049 = vadd.f32 0.0, %v1048
    %1050 = vdwg.mxu0
    %v1052 = vsel %vm81, %v959, 0
    %1054 = vmatpush.msra.mxu0 0.0
    %1055 = vmatpush.msra.mxu0 0.0
    %1056 = vmatpush.msra.mxu0 0.0
    %1057 = vmatpush.msra.mxu0 0.0
    %1058 = vmatpush.msra.mxu0 0.0
    %1059 = vmatpush.msra.mxu0 0.0
    %1060 = vmatpush.msra.mxu0 0.0
    %1061 = vmatpush.msra.mxu0 0.0
    %1062 = vmatpush.msra.mxu0 0.0
    %1063 = vmatpush.msra.mxu0 0.0
    %1064 = vmatpush.msra.mxu0 0.0
    %1065 = vmatpush.msra.mxu0 0.0
    %1066 = vmatpush.msra.mxu0 0.0
    %1067 = vmatpush.msra.mxu0 0.0
    %1068 = vmatpush.msra.mxu0 %v869
    %1069 = vmatpush.msra.mxu0 %v867
    %1070 = vmatmul.f32.gmra.mxu0 %v1052
    %v1071 = vpop.f32.mrf.mxu0
    %v1072 = vadd.f32 %v1049, %v1071
    %1073 = vdwg.mxu0
    %1075 = vrot.lane.b32.xlu0 %v670, 32
    %v1076 = vpop.permute.xlu0 %1075
    %v1078 = vadd.f32 %v893, %v1076
    %v1079 = vadd.f32 %v1072, %v1076
    %v1080 = vadd.f32 %v1078, %v648
    %v1081 = vadd.f32 %v1079, %v649
    %v1082 = vsel %vm47, %v1080, 0.0
    %1083 = vadd.xlane.f32.xlu0 %v1082
    %v1084 = vpop.xlane.xlu0 %1083
    %v1085 = vsel %vm47, %v1081, 0.0
    %1086 = vadd.xlane.f32.xlu0 %v1085
    %v1087 = vpop.xlane.xlu0 %1086
    %v1088 = vmul.f32 %v1084, %v476
    %v1089 = vmul.f32 %v1087, %v476
    %v1090 = vsub.f32 %v1080, %v1088
    %v1091 = vsub.f32 %v1081, %v1089
    %v1092 = vmul.f32 %v1090, %v1090
    %v1093 = vmul.f32 %v1091, %v1091
    %v1094 = vsel %vm47, %v1092, 0.0
    %1095 = vadd.xlane.f32.xlu0 %v1094
    %v1096 = vpop.xlane.xlu0 %1095
    %v1097 = vsel %vm47, %v1093, 0.0
    %1098 = vadd.xlane.f32.xlu0 %v1097
    %v1099 = vpop.xlane.xlu0 %1098
    %v1100 = vmul.f32 %v1096, %v476
    %v1101 = vmul.f32 %v1099, %v476
    %v1102 = vadd.f32 %v1100, 1e-05
    %v1103 = vadd.f32 %v1101, 1e-05
    %v1104 = vrsqrt.pop %v1102
    %v1105 = vmul.f32 %v1104, %v1102
    %v1106 = vmul.f32 %v1105, %v1104
    %v1107 = vmul.f32 0.5, %v1106
    %v1108 = vsub.f32 1.5, %v1107
    %v1109 = vmul.f32 %v1104, %v1108
    %vm1110 = vweird.f32 %v1102
    %vm1111 = vweird.f32 %v1104
    %vm1112 = vmor %vm1110, %vm1111
    %v1113 = vsel %vm1112, %v1104, %v1109
    %v1114 = vrsqrt.pop %v1103
    %v1115 = vmul.f32 %v1114, %v1103
    %v1116 = vmul.f32 %v1115, %v1114
    %v1117 = vmul.f32 0.5, %v1116
    %v1118 = vsub.f32 1.5, %v1117
    %v1119 = vmul.f32 %v1114, %v1118
    %vm1120 = vweird.f32 %v1103
    %vm1121 = vweird.f32 %v1114
    %vm1122 = vmor %vm1120, %vm1121
    %v1123 = vsel %vm1122, %v1114, %v1119
    %v1124 = vmul.f32 %v1090, %v1113
    %v1125 = vmul.f32 %v1091, %v1123
    %v1126 = vperm.slane %v669, 2
    %v1127 = vmul.f32 %v1124, %v1126
    %v1128 = vmul.f32 %v1125, %v1126
    %v1129 = vperm.slane %v669, 3
    %v1130 = vadd.f32 %v1127, %v1129
    %v1131 = vadd.f32 %v1128, %v1129
    %v1132 = vmul.f32 %v1130, %v524
    %v1133 = vmul.f32 %v1131, %v529
    %v1134 = vperm.slane %v669, 0
    %v1136 = vsel %vm47, %v1132, 0
    %v1139 = vsel %vm47, %v1133, 0
    %1141 = vmatpush.msra.mxu0 0.0
    %1142 = vmatpush.msra.mxu0 0.0
    %1143 = vmatpush.msra.mxu0 0.0
    %1144 = vmatpush.msra.mxu0 0.0
    %1145 = vmatpush.msra.mxu0 0.0
    %1146 = vmatpush.msra.mxu0 0.0
    %1147 = vmatpush.msra.mxu0 0.0
    %1148 = vmatpush.msra.mxu0 0.0
    %1149 = vmatpush.msra.mxu0 0.0
    %1150 = vmatpush.msra.mxu0 0.0
    %1151 = vmatpush.msra.mxu0 0.0
    %1152 = vmatpush.msra.mxu0 0.0
    %1153 = vmatpush.msra.mxu0 %v660
    %1154 = vmatpush.msra.mxu0 %v659
    %1155 = vmatpush.msra.mxu0 %v658
    %1156 = vmatpush.msra.mxu0 %v657
    %1157 = vmatmul.f32.gmra.mxu0 %v1136
    %v1158 = vpop.f32.mrf.mxu0
    %v1159 = vadd.f32 %v1134, %v1158
    %1160 = vmatmul.f32.gmra.mxu0 %v1139
    %v1161 = vpop.f32.mrf.mxu0
    %v1162 = vadd.f32 %v1134, %v1161
    %1163 = vdwg.mxu0
    %v1164 = vmax.f32 %v1159, 0.0
    %v1165 = vmax.f32 %v1162, 0.0
    %v1166 = vperm.slane %v669, 1
    %v1168 = vsel %vm566, %v1164, 0
    %v1171 = vsel %vm566, %v1165, 0
    %1173 = vmatpush.msra.mxu0 0.0
    %1174 = vmatpush.msra.mxu0 0.0
    %1175 = vmatpush.msra.mxu0 0.0
    %1176 = vmatpush.msra.mxu0 0.0
    %1177 = vmatpush.msra.mxu0 0.0
    %1178 = vmatpush.msra.mxu0 0.0
    %1179 = vmatpush.msra.mxu0 0.0
    %1180 = vmatpush.msra.mxu0 0.0
    %1181 = vmatpush.msra.mxu0 %v668
    %1182 = vmatpush.msra.mxu0 %v667
    %1183 = vmatpush.msra.mxu0 %v666
    %1184 = vmatpush.msra.mxu0 %v665
    %1185 = vmatpush.msra.mxu0 %v664
    %1186 = vmatpush.msra.mxu0 %v663
    %1187 = vmatpush.msra.mxu0 %v662
    %1188 = vmatpush.msra.mxu0 %v661
    %1189 = vmatmul.f32.gmra.mxu0 %v1168
    %v1190 = vpop.f32.mrf.mxu0
    %v1191 = vadd.f32 %v1166, %v1190
    %1192 = vmatmul.f32.gmra.mxu0 %v1171
    %v1193 = vpop.f32.mrf.mxu0
    %v1194 = vadd.f32 %v1166, %v1193
    %1195 = vdwg.mxu0
    %v1196 = vadd.f32 %v1191, %v1132
    %v1197 = vadd.f32 %v1194, %v1133
    %v1198 = vsel %vm47, %v1196, 0.0
    %1199 = vadd.xlane.f32.xlu0 %v1198
    %v1200 = vpop.xlane.xlu0 %1199
    %v1201 = vsel %vm47, %v1197, 0.0
    %1202 = vadd.xlane.f32.xlu0 %v1201
    %v1203 = vpop.xlane.xlu0 %1202
    %v1204 = vmul.f32 %v1200, %v476
    %v1205 = vmul.f32 %v1203, %v476
    %v1206 = vsub.f32 %v1196, %v1204
    %v1207 = vsub.f32 %v1197, %v1205
    %v1208 = vmul.f32 %v1206, %v1206
    %v1209 = vmul.f32 %v1207, %v1207
    %v1210 = vsel %vm47, %v1208, 0.0
    %1211 = vadd.xlane.f32.xlu0 %v1210
    %v1212 = vpop.xlane.xlu0 %1211
    %v1213 = vsel %vm47, %v1209, 0.0
    %1214 = vadd.xlane.f32.xlu0 %v1213
    %v1215 = vpop.xlane.xlu0 %1214
    %v1216 = vmul.f32 %v1212, %v476
    %v1217 = vmul.f32 %v1215, %v476
    %v1218 = vadd.f32 %v1216, 1e-05
    %v1219 = vadd.f32 %v1217, 1e-05
    %v1220 = vrsqrt.pop %v1218
    %v1221 = vmul.f32 %v1220, %v1218
    %v1222 = vmul.f32 %v1221, %v1220
    %v1223 = vmul.f32 0.5, %v1222
    %v1224 = vsub.f32 1.5, %v1223
    %v1225 = vmul.f32 %v1220, %v1224
    %vm1226 = vweird.f32 %v1218
    %vm1227 = vweird.f32 %v1220
    %vm1228 = vmor %vm1226, %vm1227
    %v1229 = vsel %vm1228, %v1220, %v1225
    %v1230 = vrsqrt.pop %v1219
    %v1231 = vmul.f32 %v1230, %v1219
    %v1232 = vmul.f32 %v1231, %v1230
    %v1233 = vmul.f32 0.5, %v1232
    %v1234 = vsub.f32 1.5, %v1233
    %v1235 = vmul.f32 %v1230, %v1234
    %vm1236 = vweird.f32 %v1219
    %vm1237 = vweird.f32 %v1230
    %vm1238 = vmor %vm1236, %vm1237
    %v1239 = vsel %vm1238, %v1230, %v1235
    %v1240 = vmul.f32 %v1206, %v1229
    %v1241 = vmul.f32 %v1207, %v1239
    %v1242 = vperm.slane %v669, 4
    %v1243 = vmul.f32 %v1240, %v1242
    %v1244 = vmul.f32 %v1241, %v1242
    %v1245 = vperm.slane %v669, 5
    %v1246 = vadd.f32 %v1243, %v1245
    %v1247 = vadd.f32 %v1244, %v1245
    %v1248 = vmul.f32 %v1246, %v524
    %v1249 = vmul.f32 %v1247, %v529
    %v1250 = vld [vmem:[%s5] sm:$0xff]
    %v1251 = vld [vmem:[%s5 + $0x8] sm:$0xff]
    %v1252 = vld [vmem:[%s5 + $0x10] sm:$0xff]
    %v1253 = vld [vmem:[%s5 + $0x18] sm:$0xff]
    %v1255 = vsel %vm47, %v1248, 0
    %v1258 = vsel %vm47, %v1249, 0
    %1260 = vmatpush.msra.mxu0 0.0
    %1261 = vmatpush.msra.mxu0 0.0
    %1262 = vmatpush.msra.mxu0 0.0
    %1263 = vmatpush.msra.mxu0 0.0
    %1264 = vmatpush.msra.mxu0 0.0
    %1265 = vmatpush.msra.mxu0 0.0
    %1266 = vmatpush.msra.mxu0 0.0
    %1267 = vmatpush.msra.mxu0 0.0
    %1268 = vmatpush.msra.mxu0 0.0
    %1269 = vmatpush.msra.mxu0 0.0
    %1270 = vmatpush.msra.mxu0 0.0
    %1271 = vmatpush.msra.mxu0 0.0
    %1272 = vmatpush.msra.mxu0 %v1253
    %1273 = vmatpush.msra.mxu0 %v1252
    %1274 = vmatpush.msra.mxu0 %v1251
    %1275 = vmatpush.msra.mxu0 %v1250
    %1276 = vmatmul.f32.gmra.mxu0 %v1255
    %v1277 = vpop.f32.mrf.mxu0
    %v1278 = vadd.f32 0.0, %v1277
    %1279 = vmatmul.f32.gmra.mxu0 %v1258
    %v1280 = vpop.f32.mrf.mxu0
    %v1281 = vadd.f32 0.0, %v1280
    %1282 = vdwg.mxu0
    %1283 = vst [vmem:[#allocation2] sm:$0xff] %v1278
    %1284 = vst [vmem:[#allocation2 + $0x8] sm:$0xff] %v1281
    // Predicated region
    $region26: #{tpu_custom_call.1} parent=1 // pred_check
      _
    $region27: #{tpu_custom_call.1} parent=1 // pred_check_branch
      %1286 = sbr.rel (0) target = $region29
    $region28: #{tpu_custom_call.1} parent=1 // pred_region
      %1288 = vsyncadd [#allocation3], 0
      %s1289 = sshll.u32 [#allocation2], 4
      %s1290 = int_to_ptr.vmem [resolvable:$true] %s1289
      %s1291 = sshll.u32 %s6, 4
      %s1292 = int_to_ptr.hbm [resolvable:$true] %s1291
      %1297 = dma.vmem_to_hbm [thread:$0]  %s1290, 256, %s1292, [#allocation3], 128, 128, 8
    $region29: #{tpu_custom_call.1} parent=1 // pred_fallthru
      _
    // Predicated region
    $region30: #{tpu_custom_call.1} parent=1 // pred_check
      _
    $region31: #{tpu_custom_call.1} parent=1 // pred_check_branch
      %1299 = sbr.rel (0) target = $region33
    $region32: #{tpu_custom_call.1} parent=1 // pred_region
      %1301 = dma.done [#allocation3], 256
    $region33: #{tpu_custom_call.1} parent=1 // pred_fallthru
      _
    %1302 = vsyncpa [#allocation3], 1

</llo_original>
